<compile_context>
chip_gen: v6e
topology: v6e:2x2x1
jax: 0.10.0
libtpu: 0.0.40
codegen_flags: <defaults>
</compile_context>

<pallas_src>
import jax
import jax.numpy as jnp
from jax.experimental import pallas as pl
from jax.experimental.pallas import tpu as pltpu  # noqa: F401  (TPU backend)


# ------------------------------ Fused kernel ---------------------------------
def _make_fused_lstm_kernel(num_layers, T, Bp, B, H):
    """Builds the fused kernel for a fixed (num_layers, T, Bp, B, H)."""

    def kernel(*refs):
        # refs = (x, [w_ih, w_hh, b] * L, gamma, beta, w_fc_row, b_fc, out)
        x_ref = refs[0]
        layer_refs = refs[1:1 + 3 * num_layers]
        gamma_ref, beta_ref, w_fc_ref, b_fc_ref, out_ref = refs[1 + 3 * num_layers:]

        # seq: flat time-major sequence (T*Bp, feat) for the current layer input.
        seq = x_ref[...]
        h_last = None

        for l in range(num_layers):
            w_ih = layer_refs[3 * l][...]      # (in_dim, 4H)
            w_hh = layer_refs[3 * l + 1][...]  # (H, 4H)
            b = layer_refs[3 * l + 2][...]     # (1, 4H)

            # Hoisted input projection for all timesteps at once (no recurrent dep).
            xg = jnp.dot(seq, w_ih, preferred_element_type=jnp.float32) + b  # (T*Bp, 4H)

            h = jnp.zeros((Bp, H), jnp.float32)
            c = jnp.zeros((Bp, H), jnp.float32)
            hs = []
            for t in range(T):  # fully unrolled; static sublane-aligned slices
                gates = (xg[t * Bp:(t + 1) * Bp, :]
                         + jnp.dot(h, w_hh, preferred_element_type=jnp.float32))
                # One full-width sigmoid + tanh over the whole gates vreg (EUP),
                # then per-gate lane slices (PyTorch gate order: i, f, g, o).
                sg = jax.nn.sigmoid(gates)
                tg = jnp.tanh(gates)
                i_g = sg[:, 0 * H:1 * H]
                f_g = sg[:, 1 * H:2 * H]
                g_g = tg[:, 2 * H:3 * H]
                o_g = sg[:, 3 * H:4 * H]

                c = f_g * c + i_g * g_g
                h = o_g * jnp.tanh(c)
                if l < num_layers - 1:
                    hs.append(h)

            if l < num_layers - 1:
                seq = jnp.concatenate(hs, axis=0)  # (T*Bp, H) for the next layer
            h_last = h                              # == out[:, -1] of this layer

        # ---- BatchNorm1d (train-mode batch statistics over the REAL batch) ----
        row = jax.lax.broadcasted_iota(jnp.int32, (Bp, H), 0)
        mask = (row < B).astype(jnp.float32)
        inv_b = jnp.float32(1.0 / B)
        mean = jnp.sum(h_last * mask, axis=0, keepdims=True) * inv_b     # (1, H)
        diff = (h_last - mean) * mask
        var = jnp.sum(diff * diff, axis=0, keepdims=True) * inv_b        # biased var
        y = (h_last - mean) * jax.lax.rsqrt(var + 1e-5) * gamma_ref[...] + beta_ref[...]

        # ---- Linear(H, 1) as multiply + lane reduction (no N=1 MXU matmul) ----
        out_ref[...] = (jnp.sum(y * w_fc_ref[...], axis=-1, keepdims=True)
                        + b_fc_ref[...])                                  # (Bp, 1)

    return kernel


# --------------------------------- Wrapper ------------------------------------
def lstm_model_forward(x, params):
    """x: (B, T, input_size), batch_first, like the PyTorch module."""
    B, T, I = x.shape
    H = params["gamma"].shape[1]
    num_layers = len(params["layers"])
    Bp = ((B + 7) // 8) * 8  # pad batch to a sublane multiple

    x_tmaj = jnp.transpose(x, (1, 0, 2)).astype(jnp.float32)      # (T, B, I)
    x_pad = jnp.pad(x_tmaj, ((0, 0), (0, Bp - B), (0, 0)))        # (T, Bp, I)
    x_flat = x_pad.reshape(T * Bp, I)                             # time-major flat

    args = [x_flat]
    for (w_ih_t, w_hh_t, b) in params["layers"]:
        args += [w_ih_t, w_hh_t, b]
    args += [params["gamma"], params["beta"], params["w_fc"], params["b_fc"]]

    kernel = _make_fused_lstm_kernel(num_layers, T, Bp, B, H)
    out_pad = pl.pallas_call(
        kernel,
        out_shape=jax.ShapeDtypeStruct((Bp, 1), jnp.float32),
    )(*args)
    return out_pad[:B]


# ------------------------------- Param init (synthetic) ------------------------
def init_params(key, input_size, hidden_size, num_layers):
    k = 1.0 / jnp.sqrt(jnp.float32(hidden_size))
    layers = []
    for layer in range(num_layers):
        in_dim = input_size if layer == 0 else hidden_size
        key, k1, k2, k3, k4 = jax.random.split(key, 5)
        w_ih = jax.random.uniform(k1, (4 * hidden_size, in_dim), jnp.float32, -k, k)
        w_hh = jax.random.uniform(k2, (4 * hidden_size, hidden_size), jnp.float32, -k, k)
        b_ih = jax.random.uniform(k3, (4 * hidden_size,), jnp.float32, -k, k)
        b_hh = jax.random.uniform(k4, (4 * hidden_size,), jnp.float32, -k, k)
        # Pre-transpose weights and pre-sum biases for x @ W_ih^T / h @ W_hh^T.
        layers.append((w_ih.T, w_hh.T, (b_ih + b_hh)[None, :]))
    key, k5, k6 = jax.random.split(key, 3)
    params = {
        "layers": layers,
        # BatchNorm1d default init: weight=1, bias=0
        "gamma": jnp.ones((1, hidden_size), jnp.float32),
        "beta": jnp.zeros((1, hidden_size), jnp.float32),
        # Linear(hidden_size, 1): stored as a (1, H) row for the in-kernel reduce
        "w_fc": jax.random.uniform(k5, (1, hidden_size), jnp.float32, -k, k),
        "b_fc": jax.random.uniform(k6, (1, 1), jnp.float32, -k, k),
    }
    return params


# --------------------------------- Reference ----------------------------------
def reference_forward(x, params):
    B, T, _ = x.shape
    out = x.astype(jnp.float32)
    # TODO(synk): nn.LSTM inter-layer dropout (train mode) is stochastic and not
    # implemented; the example uses dropout=0.0 so semantics match exactly.
    for (w_ih_t, w_hh_t, b) in params["layers"]:
        H = w_hh_t.shape[0]
        h = jnp.zeros((B, H), jnp.float32)
        c = jnp.zeros((B, H), jnp.float32)
        hs = []
        for t in range(T):
            gates = out[:, t] @ w_ih_t + h @ w_hh_t + b
            i_g = jax.nn.sigmoid(gates[:, :H])
            f_g = jax.nn.sigmoid(gates[:, H:2 * H])
            g_g = jnp.tanh(gates[:, 2 * H:3 * H])
            o_g = jax.nn.sigmoid(gates[:, 3 * H:])
            c = f_g * c + i_g * g_g
            h = o_g * jnp.tanh(c)
            hs.append(h)
        out = jnp.stack(hs, axis=1)
    hl = out[:, -1]
    mean = hl.mean(0, keepdims=True)
    var = ((hl - mean) ** 2).mean(0, keepdims=True)
    y = (hl - mean) * jax.lax.rsqrt(var + 1e-5) * params["gamma"] + params["beta"]
    return y @ params["w_fc"].T + params["b_fc"]


# ----------------------------------- Main --------------------------------------
if __name__ == "__main__":
    B, T = 4, 8
    input_size, hidden_size, num_layers = 8, 32, 2

    key = jax.random.PRNGKey(0)
    key, pkey, xkey = jax.random.split(key, 3)
    params = init_params(pkey, input_size, hidden_size, num_layers)
    x = jax.random.normal(xkey, (B, T, input_size), jnp.float32)

    fwd = jax.jit(lstm_model_forward)
    out = jax.block_until_ready(fwd(x, params))
    ref = jax.block_until_ready(reference_forward(x, params))

    assert out.shape == (B, 1), out.shape
    assert jnp.allclose(out, ref, atol=1e-4, rtol=1e-4), (out, ref)
    print("KERNEL_OK")
</pallas_src>

<mosaic_0001>
module attributes {stable_mosaic.version = 11 : i64} {
  func.func @kernel(%arg0: memref<64x8xf32, #tpu.memory_space<vmem>>, %arg1: memref<8x128xf32, #tpu.memory_space<vmem>>, %arg2: memref<32x128xf32, #tpu.memory_space<vmem>>, %arg3: memref<1x128xf32, #tpu.memory_space<vmem>>, %arg4: memref<32x128xf32, #tpu.memory_space<vmem>>, %arg5: memref<32x128xf32, #tpu.memory_space<vmem>>, %arg6: memref<1x128xf32, #tpu.memory_space<vmem>>, %arg7: memref<1x32xf32, #tpu.memory_space<vmem>>, %arg8: memref<1x32xf32, #tpu.memory_space<vmem>>, %arg9: memref<1x32xf32, #tpu.memory_space<vmem>>, %arg10: memref<1x1xf32, #tpu.memory_space<vmem>>, %arg11: memref<8x1xf32, #tpu.memory_space<vmem>>) attributes {dimension_semantics = [], scalar_prefetch = 0 : i64, scratch_operands = 0 : i64, tpu.core_type = #tpu.core_type<tc>} {
    %c0 = arith.constant 0 : index
    %c0_0 = arith.constant 0 : index
    %0 = vector.load %arg0[%c0, %c0_0] : memref<64x8xf32, #tpu.memory_space<vmem>>, vector<64x8xf32>
    %c0_1 = arith.constant 0 : index
    %c0_2 = arith.constant 0 : index
    %1 = vector.load %arg1[%c0_1, %c0_2] : memref<8x128xf32, #tpu.memory_space<vmem>>, vector<8x128xf32>
    %c0_3 = arith.constant 0 : index
    %c0_4 = arith.constant 0 : index
    %2 = vector.load %arg2[%c0_3, %c0_4] : memref<32x128xf32, #tpu.memory_space<vmem>>, vector<32x128xf32>
    %c0_5 = arith.constant 0 : index
    %c0_6 = arith.constant 0 : index
    %3 = vector.load %arg3[%c0_5, %c0_6] : memref<1x128xf32, #tpu.memory_space<vmem>>, vector<1x128xf32>
    %cst = arith.constant dense<0.000000e+00> : vector<64x128xf32>
    %4 = tpu.matmul %0, %1, %cst {dimension_numbers = #tpu.dot_dimension_numbers<[1], [0], [0], [1], [0, 0, 1, 1], [], []>} : vector<64x8xf32>, vector<8x128xf32>, vector<64x128xf32> -> vector<64x128xf32>
    %5 = vector.broadcast %3 : vector<1x128xf32> to vector<64x128xf32>
    %6 = arith.addf %4, %5 : vector<64x128xf32>
    %cst_7 = arith.constant 0.000000e+00 : f32
    %7 = vector.broadcast %cst_7 : f32 to vector<8x32xf32>
    %cst_8 = arith.constant 0.000000e+00 : f32
    %8 = vector.broadcast %cst_8 : f32 to vector<8x32xf32>
    %9 = vector.extract_strided_slice %6 {offsets = [0, 0], sizes = [8, 128], strides = [1, 1]} : vector<64x128xf32> to vector<8x128xf32>
    %cst_9 = arith.constant dense<0.000000e+00> : vector<8x128xf32>
    %10 = tpu.matmul %7, %2, %cst_9 {dimension_numbers = #tpu.dot_dimension_numbers<[1], [0], [0], [1], [0, 0, 1, 1], [], []>} : vector<8x32xf32>, vector<32x128xf32>, vector<8x128xf32> -> vector<8x128xf32>
    %11 = arith.addf %9, %10 : vector<8x128xf32>
    %12 = arith.negf %11 : vector<8x128xf32>
    %13 = math.exp %12 : vector<8x128xf32>
    %cst_10 = arith.constant 1.000000e+00 : f32
    %14 = vector.broadcast %cst_10 : f32 to vector<8x128xf32>
    %15 = arith.addf %14, %13 : vector<8x128xf32>
    %16 = arith.divf %14, %15 : vector<8x128xf32>
    %17 = math.tanh %11 : vector<8x128xf32>
    %18 = vector.extract_strided_slice %16 {offsets = [0, 0], sizes = [8, 32], strides = [1, 1]} : vector<8x128xf32> to vector<8x32xf32>
    %19 = vector.extract_strided_slice %16 {offsets = [0, 32], sizes = [8, 32], strides = [1, 1]} : vector<8x128xf32> to vector<8x32xf32>
    %20 = vector.extract_strided_slice %17 {offsets = [0, 64], sizes = [8, 32], strides = [1, 1]} : vector<8x128xf32> to vector<8x32xf32>
    %21 = vector.extract_strided_slice %16 {offsets = [0, 96], sizes = [8, 32], strides = [1, 1]} : vector<8x128xf32> to vector<8x32xf32>
    %22 = arith.mulf %19, %8 : vector<8x32xf32>
    %23 = arith.mulf %18, %20 : vector<8x32xf32>
    %24 = arith.addf %22, %23 : vector<8x32xf32>
    %25 = math.tanh %24 : vector<8x32xf32>
    %26 = arith.mulf %21, %25 : vector<8x32xf32>
    %27 = vector.extract_strided_slice %6 {offsets = [8, 0], sizes = [8, 128], strides = [1, 1]} : vector<64x128xf32> to vector<8x128xf32>
    %cst_11 = arith.constant dense<0.000000e+00> : vector<8x128xf32>
    %28 = tpu.matmul %26, %2, %cst_11 {dimension_numbers = #tpu.dot_dimension_numbers<[1], [0], [0], [1], [0, 0, 1, 1], [], []>} : vector<8x32xf32>, vector<32x128xf32>, vector<8x128xf32> -> vector<8x128xf32>
    %29 = arith.addf %27, %28 : vector<8x128xf32>
    %30 = arith.negf %29 : vector<8x128xf32>
    %31 = math.exp %30 : vector<8x128xf32>
    %cst_12 = arith.constant 1.000000e+00 : f32
    %32 = vector.broadcast %cst_12 : f32 to vector<8x128xf32>
    %33 = arith.addf %32, %31 : vector<8x128xf32>
    %34 = arith.divf %32, %33 : vector<8x128xf32>
    %35 = math.tanh %29 : vector<8x128xf32>
    %36 = vector.extract_strided_slice %34 {offsets = [0, 0], sizes = [8, 32], strides = [1, 1]} : vector<8x128xf32> to vector<8x32xf32>
    %37 = vector.extract_strided_slice %34 {offsets = [0, 32], sizes = [8, 32], strides = [1, 1]} : vector<8x128xf32> to vector<8x32xf32>
    %38 = vector.extract_strided_slice %35 {offsets = [0, 64], sizes = [8, 32], strides = [1, 1]} : vector<8x128xf32> to vector<8x32xf32>
    %39 = vector.extract_strided_slice %34 {offsets = [0, 96], sizes = [8, 32], strides = [1, 1]} : vector<8x128xf32> to vector<8x32xf32>
    %40 = arith.mulf %37, %24 : vector<8x32xf32>
    %41 = arith.mulf %36, %38 : vector<8x32xf32>
    %42 = arith.addf %40, %41 : vector<8x32xf32>
    %43 = math.tanh %42 : vector<8x32xf32>
    %44 = arith.mulf %39, %43 : vector<8x32xf32>
    %45 = vector.extract_strided_slice %6 {offsets = [16, 0], sizes = [8, 128], strides = [1, 1]} : vector<64x128xf32> to vector<8x128xf32>
    %cst_13 = arith.constant dense<0.000000e+00> : vector<8x128xf32>
    %46 = tpu.matmul %44, %2, %cst_13 {dimension_numbers = #tpu.dot_dimension_numbers<[1], [0], [0], [1], [0, 0, 1, 1], [], []>} : vector<8x32xf32>, vector<32x128xf32>, vector<8x128xf32> -> vector<8x128xf32>
    %47 = arith.addf %45, %46 : vector<8x128xf32>
    %48 = arith.negf %47 : vector<8x128xf32>
    %49 = math.exp %48 : vector<8x128xf32>
    %cst_14 = arith.constant 1.000000e+00 : f32
    %50 = vector.broadcast %cst_14 : f32 to vector<8x128xf32>
    %51 = arith.addf %50, %49 : vector<8x128xf32>
    %52 = arith.divf %50, %51 : vector<8x128xf32>
    %53 = math.tanh %47 : vector<8x128xf32>
    %54 = vector.extract_strided_slice %52 {offsets = [0, 0], sizes = [8, 32], strides = [1, 1]} : vector<8x128xf32> to vector<8x32xf32>
    %55 = vector.extract_strided_slice %52 {offsets = [0, 32], sizes = [8, 32], strides = [1, 1]} : vector<8x128xf32> to vector<8x32xf32>
    %56 = vector.extract_strided_slice %53 {offsets = [0, 64], sizes = [8, 32], strides = [1, 1]} : vector<8x128xf32> to vector<8x32xf32>
    %57 = vector.extract_strided_slice %52 {offsets = [0, 96], sizes = [8, 32], strides = [1, 1]} : vector<8x128xf32> to vector<8x32xf32>
    %58 = arith.mulf %55, %42 : vector<8x32xf32>
    %59 = arith.mulf %54, %56 : vector<8x32xf32>
    %60 = arith.addf %58, %59 : vector<8x32xf32>
    %61 = math.tanh %60 : vector<8x32xf32>
    %62 = arith.mulf %57, %61 : vector<8x32xf32>
    %63 = vector.extract_strided_slice %6 {offsets = [24, 0], sizes = [8, 128], strides = [1, 1]} : vector<64x128xf32> to vector<8x128xf32>
    %cst_15 = arith.constant dense<0.000000e+00> : vector<8x128xf32>
    %64 = tpu.matmul %62, %2, %cst_15 {dimension_numbers = #tpu.dot_dimension_numbers<[1], [0], [0], [1], [0, 0, 1, 1], [], []>} : vector<8x32xf32>, vector<32x128xf32>, vector<8x128xf32> -> vector<8x128xf32>
    %65 = arith.addf %63, %64 : vector<8x128xf32>
    %66 = arith.negf %65 : vector<8x128xf32>
    %67 = math.exp %66 : vector<8x128xf32>
    %cst_16 = arith.constant 1.000000e+00 : f32
    %68 = vector.broadcast %cst_16 : f32 to vector<8x128xf32>
    %69 = arith.addf %68, %67 : vector<8x128xf32>
    %70 = arith.divf %68, %69 : vector<8x128xf32>
    %71 = math.tanh %65 : vector<8x128xf32>
    %72 = vector.extract_strided_slice %70 {offsets = [0, 0], sizes = [8, 32], strides = [1, 1]} : vector<8x128xf32> to vector<8x32xf32>
    %73 = vector.extract_strided_slice %70 {offsets = [0, 32], sizes = [8, 32], strides = [1, 1]} : vector<8x128xf32> to vector<8x32xf32>
    %74 = vector.extract_strided_slice %71 {offsets = [0, 64], sizes = [8, 32], strides = [1, 1]} : vector<8x128xf32> to vector<8x32xf32>
    %75 = vector.extract_strided_slice %70 {offsets = [0, 96], sizes = [8, 32], strides = [1, 1]} : vector<8x128xf32> to vector<8x32xf32>
    %76 = arith.mulf %73, %60 : vector<8x32xf32>
    %77 = arith.mulf %72, %74 : vector<8x32xf32>
    %78 = arith.addf %76, %77 : vector<8x32xf32>
    %79 = math.tanh %78 : vector<8x32xf32>
    %80 = arith.mulf %75, %79 : vector<8x32xf32>
    %81 = vector.extract_strided_slice %6 {offsets = [32, 0], sizes = [8, 128], strides = [1, 1]} : vector<64x128xf32> to vector<8x128xf32>
    %cst_17 = arith.constant dense<0.000000e+00> : vector<8x128xf32>
    %82 = tpu.matmul %80, %2, %cst_17 {dimension_numbers = #tpu.dot_dimension_numbers<[1], [0], [0], [1], [0, 0, 1, 1], [], []>} : vector<8x32xf32>, vector<32x128xf32>, vector<8x128xf32> -> vector<8x128xf32>
    %83 = arith.addf %81, %82 : vector<8x128xf32>
    %84 = arith.negf %83 : vector<8x128xf32>
    %85 = math.exp %84 : vector<8x128xf32>
    %cst_18 = arith.constant 1.000000e+00 : f32
    %86 = vector.broadcast %cst_18 : f32 to vector<8x128xf32>
    %87 = arith.addf %86, %85 : vector<8x128xf32>
    %88 = arith.divf %86, %87 : vector<8x128xf32>
    %89 = math.tanh %83 : vector<8x128xf32>
    %90 = vector.extract_strided_slice %88 {offsets = [0, 0], sizes = [8, 32], strides = [1, 1]} : vector<8x128xf32> to vector<8x32xf32>
    %91 = vector.extract_strided_slice %88 {offsets = [0, 32], sizes = [8, 32], strides = [1, 1]} : vector<8x128xf32> to vector<8x32xf32>
    %92 = vector.extract_strided_slice %89 {offsets = [0, 64], sizes = [8, 32], strides = [1, 1]} : vector<8x128xf32> to vector<8x32xf32>
    %93 = vector.extract_strided_slice %88 {offsets = [0, 96], sizes = [8, 32], strides = [1, 1]} : vector<8x128xf32> to vector<8x32xf32>
    %94 = arith.mulf %91, %78 : vector<8x32xf32>
    %95 = arith.mulf %90, %92 : vector<8x32xf32>
    %96 = arith.addf %94, %95 : vector<8x32xf32>
    %97 = math.tanh %96 : vector<8x32xf32>
    %98 = arith.mulf %93, %97 : vector<8x32xf32>
    %99 = vector.extract_strided_slice %6 {offsets = [40, 0], sizes = [8, 128], strides = [1, 1]} : vector<64x128xf32> to vector<8x128xf32>
    %cst_19 = arith.constant dense<0.000000e+00> : vector<8x128xf32>
    %100 = tpu.matmul %98, %2, %cst_19 {dimension_numbers = #tpu.dot_dimension_numbers<[1], [0], [0], [1], [0, 0, 1, 1], [], []>} : vector<8x32xf32>, vector<32x128xf32>, vector<8x128xf32> -> vector<8x128xf32>
    %101 = arith.addf %99, %100 : vector<8x128xf32>
    %102 = arith.negf %101 : vector<8x128xf32>
    %103 = math.exp %102 : vector<8x128xf32>
    %cst_20 = arith.constant 1.000000e+00 : f32
    %104 = vector.broadcast %cst_20 : f32 to vector<8x128xf32>
    %105 = arith.addf %104, %103 : vector<8x128xf32>
    %106 = arith.divf %104, %105 : vector<8x128xf32>
    %107 = math.tanh %101 : vector<8x128xf32>
    %108 = vector.extract_strided_slice %106 {offsets = [0, 0], sizes = [8, 32], strides = [1, 1]} : vector<8x128xf32> to vector<8x32xf32>
    %109 = vector.extract_strided_slice %106 {offsets = [0, 32], sizes = [8, 32], strides = [1, 1]} : vector<8x128xf32> to vector<8x32xf32>
    %110 = vector.extract_strided_slice %107 {offsets = [0, 64], sizes = [8, 32], strides = [1, 1]} : vector<8x128xf32> to vector<8x32xf32>
    %111 = vector.extract_strided_slice %106 {offsets = [0, 96], sizes = [8, 32], strides = [1, 1]} : vector<8x128xf32> to vector<8x32xf32>
    %112 = arith.mulf %109, %96 : vector<8x32xf32>
    %113 = arith.mulf %108, %110 : vector<8x32xf32>
    %114 = arith.addf %112, %113 : vector<8x32xf32>
    %115 = math.tanh %114 : vector<8x32xf32>
    %116 = arith.mulf %111, %115 : vector<8x32xf32>
    %117 = vector.extract_strided_slice %6 {offsets = [48, 0], sizes = [8, 128], strides = [1, 1]} : vector<64x128xf32> to vector<8x128xf32>
    %cst_21 = arith.constant dense<0.000000e+00> : vector<8x128xf32>
    %118 = tpu.matmul %116, %2, %cst_21 {dimension_numbers = #tpu.dot_dimension_numbers<[1], [0], [0], [1], [0, 0, 1, 1], [], []>} : vector<8x32xf32>, vector<32x128xf32>, vector<8x128xf32> -> vector<8x128xf32>
    %119 = arith.addf %117, %118 : vector<8x128xf32>
    %120 = arith.negf %119 : vector<8x128xf32>
    %121 = math.exp %120 : vector<8x128xf32>
    %cst_22 = arith.constant 1.000000e+00 : f32
    %122 = vector.broadcast %cst_22 : f32 to vector<8x128xf32>
    %123 = arith.addf %122, %121 : vector<8x128xf32>
    %124 = arith.divf %122, %123 : vector<8x128xf32>
    %125 = math.tanh %119 : vector<8x128xf32>
    %126 = vector.extract_strided_slice %124 {offsets = [0, 0], sizes = [8, 32], strides = [1, 1]} : vector<8x128xf32> to vector<8x32xf32>
    %127 = vector.extract_strided_slice %124 {offsets = [0, 32], sizes = [8, 32], strides = [1, 1]} : vector<8x128xf32> to vector<8x32xf32>
    %128 = vector.extract_strided_slice %125 {offsets = [0, 64], sizes = [8, 32], strides = [1, 1]} : vector<8x128xf32> to vector<8x32xf32>
    %129 = vector.extract_strided_slice %124 {offsets = [0, 96], sizes = [8, 32], strides = [1, 1]} : vector<8x128xf32> to vector<8x32xf32>
    %130 = arith.mulf %127, %114 : vector<8x32xf32>
    %131 = arith.mulf %126, %128 : vector<8x32xf32>
    %132 = arith.addf %130, %131 : vector<8x32xf32>
    %133 = math.tanh %132 : vector<8x32xf32>
    %134 = arith.mulf %129, %133 : vector<8x32xf32>
    %135 = vector.extract_strided_slice %6 {offsets = [56, 0], sizes = [8, 128], strides = [1, 1]} : vector<64x128xf32> to vector<8x128xf32>
    %cst_23 = arith.constant dense<0.000000e+00> : vector<8x128xf32>
    %136 = tpu.matmul %134, %2, %cst_23 {dimension_numbers = #tpu.dot_dimension_numbers<[1], [0], [0], [1], [0, 0, 1, 1], [], []>} : vector<8x32xf32>, vector<32x128xf32>, vector<8x128xf32> -> vector<8x128xf32>
    %137 = arith.addf %135, %136 : vector<8x128xf32>
    %138 = arith.negf %137 : vector<8x128xf32>
    %139 = math.exp %138 : vector<8x128xf32>
    %cst_24 = arith.constant 1.000000e+00 : f32
    %140 = vector.broadcast %cst_24 : f32 to vector<8x128xf32>
    %141 = arith.addf %140, %139 : vector<8x128xf32>
    %142 = arith.divf %140, %141 : vector<8x128xf32>
    %143 = math.tanh %137 : vector<8x128xf32>
    %144 = vector.extract_strided_slice %142 {offsets = [0, 0], sizes = [8, 32], strides = [1, 1]} : vector<8x128xf32> to vector<8x32xf32>
    %145 = vector.extract_strided_slice %142 {offsets = [0, 32], sizes = [8, 32], strides = [1, 1]} : vector<8x128xf32> to vector<8x32xf32>
    %146 = vector.extract_strided_slice %143 {offsets = [0, 64], sizes = [8, 32], strides = [1, 1]} : vector<8x128xf32> to vector<8x32xf32>
    %147 = vector.extract_strided_slice %142 {offsets = [0, 96], sizes = [8, 32], strides = [1, 1]} : vector<8x128xf32> to vector<8x32xf32>
    %148 = arith.mulf %145, %132 : vector<8x32xf32>
    %149 = arith.mulf %144, %146 : vector<8x32xf32>
    %150 = arith.addf %148, %149 : vector<8x32xf32>
    %151 = math.tanh %150 : vector<8x32xf32>
    %152 = arith.mulf %147, %151 : vector<8x32xf32>
    %153 = tpu.concatenate %26, %44, %62, %80, %98, %116, %134, %152 in 0 : vector<8x32xf32>, vector<8x32xf32>, vector<8x32xf32>, vector<8x32xf32>, vector<8x32xf32>, vector<8x32xf32>, vector<8x32xf32>, vector<8x32xf32> -> vector<64x32xf32>
    %c0_25 = arith.constant 0 : index
    %c0_26 = arith.constant 0 : index
    %154 = vector.load %arg4[%c0_25, %c0_26] : memref<32x128xf32, #tpu.memory_space<vmem>>, vector<32x128xf32>
    %c0_27 = arith.constant 0 : index
    %c0_28 = arith.constant 0 : index
    %155 = vector.load %arg5[%c0_27, %c0_28] : memref<32x128xf32, #tpu.memory_space<vmem>>, vector<32x128xf32>
    %c0_29 = arith.constant 0 : index
    %c0_30 = arith.constant 0 : index
    %156 = vector.load %arg6[%c0_29, %c0_30] : memref<1x128xf32, #tpu.memory_space<vmem>>, vector<1x128xf32>
    %cst_31 = arith.constant dense<0.000000e+00> : vector<64x128xf32>
    %157 = tpu.matmul %153, %154, %cst_31 {dimension_numbers = #tpu.dot_dimension_numbers<[1], [0], [0], [1], [0, 0, 1, 1], [], []>} : vector<64x32xf32>, vector<32x128xf32>, vector<64x128xf32> -> vector<64x128xf32>
    %158 = vector.broadcast %156 : vector<1x128xf32> to vector<64x128xf32>
    %159 = arith.addf %157, %158 : vector<64x128xf32>
    %cst_32 = arith.constant 0.000000e+00 : f32
    %160 = vector.broadcast %cst_32 : f32 to vector<8x32xf32>
    %cst_33 = arith.constant 0.000000e+00 : f32
    %161 = vector.broadcast %cst_33 : f32 to vector<8x32xf32>
    %162 = vector.extract_strided_slice %159 {offsets = [0, 0], sizes = [8, 128], strides = [1, 1]} : vector<64x128xf32> to vector<8x128xf32>
    %cst_34 = arith.constant dense<0.000000e+00> : vector<8x128xf32>
    %163 = tpu.matmul %160, %155, %cst_34 {dimension_numbers = #tpu.dot_dimension_numbers<[1], [0], [0], [1], [0, 0, 1, 1], [], []>} : vector<8x32xf32>, vector<32x128xf32>, vector<8x128xf32> -> vector<8x128xf32>
    %164 = arith.addf %162, %163 : vector<8x128xf32>
    %165 = arith.negf %164 : vector<8x128xf32>
    %166 = math.exp %165 : vector<8x128xf32>
    %cst_35 = arith.constant 1.000000e+00 : f32
    %167 = vector.broadcast %cst_35 : f32 to vector<8x128xf32>
    %168 = arith.addf %167, %166 : vector<8x128xf32>
    %169 = arith.divf %167, %168 : vector<8x128xf32>
    %170 = math.tanh %164 : vector<8x128xf32>
    %171 = vector.extract_strided_slice %169 {offsets = [0, 0], sizes = [8, 32], strides = [1, 1]} : vector<8x128xf32> to vector<8x32xf32>
    %172 = vector.extract_strided_slice %169 {offsets = [0, 32], sizes = [8, 32], strides = [1, 1]} : vector<8x128xf32> to vector<8x32xf32>
    %173 = vector.extract_strided_slice %170 {offsets = [0, 64], sizes = [8, 32], strides = [1, 1]} : vector<8x128xf32> to vector<8x32xf32>
    %174 = vector.extract_strided_slice %169 {offsets = [0, 96], sizes = [8, 32], strides = [1, 1]} : vector<8x128xf32> to vector<8x32xf32>
    %175 = arith.mulf %172, %161 : vector<8x32xf32>
    %176 = arith.mulf %171, %173 : vector<8x32xf32>
    %177 = arith.addf %175, %176 : vector<8x32xf32>
    %178 = math.tanh %177 : vector<8x32xf32>
    %179 = arith.mulf %174, %178 : vector<8x32xf32>
    %180 = vector.extract_strided_slice %159 {offsets = [8, 0], sizes = [8, 128], strides = [1, 1]} : vector<64x128xf32> to vector<8x128xf32>
    %cst_36 = arith.constant dense<0.000000e+00> : vector<8x128xf32>
    %181 = tpu.matmul %179, %155, %cst_36 {dimension_numbers = #tpu.dot_dimension_numbers<[1], [0], [0], [1], [0, 0, 1, 1], [], []>} : vector<8x32xf32>, vector<32x128xf32>, vector<8x128xf32> -> vector<8x128xf32>
    %182 = arith.addf %180, %181 : vector<8x128xf32>
    %183 = arith.negf %182 : vector<8x128xf32>
    %184 = math.exp %183 : vector<8x128xf32>
    %cst_37 = arith.constant 1.000000e+00 : f32
    %185 = vector.broadcast %cst_37 : f32 to vector<8x128xf32>
    %186 = arith.addf %185, %184 : vector<8x128xf32>
    %187 = arith.divf %185, %186 : vector<8x128xf32>
    %188 = math.tanh %182 : vector<8x128xf32>
    %189 = vector.extract_strided_slice %187 {offsets = [0, 0], sizes = [8, 32], strides = [1, 1]} : vector<8x128xf32> to vector<8x32xf32>
    %190 = vector.extract_strided_slice %187 {offsets = [0, 32], sizes = [8, 32], strides = [1, 1]} : vector<8x128xf32> to vector<8x32xf32>
    %191 = vector.extract_strided_slice %188 {offsets = [0, 64], sizes = [8, 32], strides = [1, 1]} : vector<8x128xf32> to vector<8x32xf32>
    %192 = vector.extract_strided_slice %187 {offsets = [0, 96], sizes = [8, 32], strides = [1, 1]} : vector<8x128xf32> to vector<8x32xf32>
    %193 = arith.mulf %190, %177 : vector<8x32xf32>
    %194 = arith.mulf %189, %191 : vector<8x32xf32>
    %195 = arith.addf %193, %194 : vector<8x32xf32>
    %196 = math.tanh %195 : vector<8x32xf32>
    %197 = arith.mulf %192, %196 : vector<8x32xf32>
    %198 = vector.extract_strided_slice %159 {offsets = [16, 0], sizes = [8, 128], strides = [1, 1]} : vector<64x128xf32> to vector<8x128xf32>
    %cst_38 = arith.constant dense<0.000000e+00> : vector<8x128xf32>
    %199 = tpu.matmul %197, %155, %cst_38 {dimension_numbers = #tpu.dot_dimension_numbers<[1], [0], [0], [1], [0, 0, 1, 1], [], []>} : vector<8x32xf32>, vector<32x128xf32>, vector<8x128xf32> -> vector<8x128xf32>
    %200 = arith.addf %198, %199 : vector<8x128xf32>
    %201 = arith.negf %200 : vector<8x128xf32>
    %202 = math.exp %201 : vector<8x128xf32>
    %cst_39 = arith.constant 1.000000e+00 : f32
    %203 = vector.broadcast %cst_39 : f32 to vector<8x128xf32>
    %204 = arith.addf %203, %202 : vector<8x128xf32>
    %205 = arith.divf %203, %204 : vector<8x128xf32>
    %206 = math.tanh %200 : vector<8x128xf32>
    %207 = vector.extract_strided_slice %205 {offsets = [0, 0], sizes = [8, 32], strides = [1, 1]} : vector<8x128xf32> to vector<8x32xf32>
    %208 = vector.extract_strided_slice %205 {offsets = [0, 32], sizes = [8, 32], strides = [1, 1]} : vector<8x128xf32> to vector<8x32xf32>
    %209 = vector.extract_strided_slice %206 {offsets = [0, 64], sizes = [8, 32], strides = [1, 1]} : vector<8x128xf32> to vector<8x32xf32>
    %210 = vector.extract_strided_slice %205 {offsets = [0, 96], sizes = [8, 32], strides = [1, 1]} : vector<8x128xf32> to vector<8x32xf32>
    %211 = arith.mulf %208, %195 : vector<8x32xf32>
    %212 = arith.mulf %207, %209 : vector<8x32xf32>
    %213 = arith.addf %211, %212 : vector<8x32xf32>
    %214 = math.tanh %213 : vector<8x32xf32>
    %215 = arith.mulf %210, %214 : vector<8x32xf32>
    %216 = vector.extract_strided_slice %159 {offsets = [24, 0], sizes = [8, 128], strides = [1, 1]} : vector<64x128xf32> to vector<8x128xf32>
    %cst_40 = arith.constant dense<0.000000e+00> : vector<8x128xf32>
    %217 = tpu.matmul %215, %155, %cst_40 {dimension_numbers = #tpu.dot_dimension_numbers<[1], [0], [0], [1], [0, 0, 1, 1], [], []>} : vector<8x32xf32>, vector<32x128xf32>, vector<8x128xf32> -> vector<8x128xf32>
    %218 = arith.addf %216, %217 : vector<8x128xf32>
    %219 = arith.negf %218 : vector<8x128xf32>
    %220 = math.exp %219 : vector<8x128xf32>
    %cst_41 = arith.constant 1.000000e+00 : f32
    %221 = vector.broadcast %cst_41 : f32 to vector<8x128xf32>
    %222 = arith.addf %221, %220 : vector<8x128xf32>
    %223 = arith.divf %221, %222 : vector<8x128xf32>
    %224 = math.tanh %218 : vector<8x128xf32>
    %225 = vector.extract_strided_slice %223 {offsets = [0, 0], sizes = [8, 32], strides = [1, 1]} : vector<8x128xf32> to vector<8x32xf32>
    %226 = vector.extract_strided_slice %223 {offsets = [0, 32], sizes = [8, 32], strides = [1, 1]} : vector<8x128xf32> to vector<8x32xf32>
    %227 = vector.extract_strided_slice %224 {offsets = [0, 64], sizes = [8, 32], strides = [1, 1]} : vector<8x128xf32> to vector<8x32xf32>
    %228 = vector.extract_strided_slice %223 {offsets = [0, 96], sizes = [8, 32], strides = [1, 1]} : vector<8x128xf32> to vector<8x32xf32>
    %229 = arith.mulf %226, %213 : vector<8x32xf32>
    %230 = arith.mulf %225, %227 : vector<8x32xf32>
    %231 = arith.addf %229, %230 : vector<8x32xf32>
    %232 = math.tanh %231 : vector<8x32xf32>
    %233 = arith.mulf %228, %232 : vector<8x32xf32>
    %234 = vector.extract_strided_slice %159 {offsets = [32, 0], sizes = [8, 128], strides = [1, 1]} : vector<64x128xf32> to vector<8x128xf32>
    %cst_42 = arith.constant dense<0.000000e+00> : vector<8x128xf32>
    %235 = tpu.matmul %233, %155, %cst_42 {dimension_numbers = #tpu.dot_dimension_numbers<[1], [0], [0], [1], [0, 0, 1, 1], [], []>} : vector<8x32xf32>, vector<32x128xf32>, vector<8x128xf32> -> vector<8x128xf32>
    %236 = arith.addf %234, %235 : vector<8x128xf32>
    %237 = arith.negf %236 : vector<8x128xf32>
    %238 = math.exp %237 : vector<8x128xf32>
    %cst_43 = arith.constant 1.000000e+00 : f32
    %239 = vector.broadcast %cst_43 : f32 to vector<8x128xf32>
    %240 = arith.addf %239, %238 : vector<8x128xf32>
    %241 = arith.divf %239, %240 : vector<8x128xf32>
    %242 = math.tanh %236 : vector<8x128xf32>
    %243 = vector.extract_strided_slice %241 {offsets = [0, 0], sizes = [8, 32], strides = [1, 1]} : vector<8x128xf32> to vector<8x32xf32>
    %244 = vector.extract_strided_slice %241 {offsets = [0, 32], sizes = [8, 32], strides = [1, 1]} : vector<8x128xf32> to vector<8x32xf32>
    %245 = vector.extract_strided_slice %242 {offsets = [0, 64], sizes = [8, 32], strides = [1, 1]} : vector<8x128xf32> to vector<8x32xf32>
    %246 = vector.extract_strided_slice %241 {offsets = [0, 96], sizes = [8, 32], strides = [1, 1]} : vector<8x128xf32> to vector<8x32xf32>
    %247 = arith.mulf %244, %231 : vector<8x32xf32>
    %248 = arith.mulf %243, %245 : vector<8x32xf32>
    %249 = arith.addf %247, %248 : vector<8x32xf32>
    %250 = math.tanh %249 : vector<8x32xf32>
    %251 = arith.mulf %246, %250 : vector<8x32xf32>
    %252 = vector.extract_strided_slice %159 {offsets = [40, 0], sizes = [8, 128], strides = [1, 1]} : vector<64x128xf32> to vector<8x128xf32>
    %cst_44 = arith.constant dense<0.000000e+00> : vector<8x128xf32>
    %253 = tpu.matmul %251, %155, %cst_44 {dimension_numbers = #tpu.dot_dimension_numbers<[1], [0], [0], [1], [0, 0, 1, 1], [], []>} : vector<8x32xf32>, vector<32x128xf32>, vector<8x128xf32> -> vector<8x128xf32>
    %254 = arith.addf %252, %253 : vector<8x128xf32>
    %255 = arith.negf %254 : vector<8x128xf32>
    %256 = math.exp %255 : vector<8x128xf32>
    %cst_45 = arith.constant 1.000000e+00 : f32
    %257 = vector.broadcast %cst_45 : f32 to vector<8x128xf32>
    %258 = arith.addf %257, %256 : vector<8x128xf32>
    %259 = arith.divf %257, %258 : vector<8x128xf32>
    %260 = math.tanh %254 : vector<8x128xf32>
    %261 = vector.extract_strided_slice %259 {offsets = [0, 0], sizes = [8, 32], strides = [1, 1]} : vector<8x128xf32> to vector<8x32xf32>
    %262 = vector.extract_strided_slice %259 {offsets = [0, 32], sizes = [8, 32], strides = [1, 1]} : vector<8x128xf32> to vector<8x32xf32>
    %263 = vector.extract_strided_slice %260 {offsets = [0, 64], sizes = [8, 32], strides = [1, 1]} : vector<8x128xf32> to vector<8x32xf32>
    %264 = vector.extract_strided_slice %259 {offsets = [0, 96], sizes = [8, 32], strides = [1, 1]} : vector<8x128xf32> to vector<8x32xf32>
    %265 = arith.mulf %262, %249 : vector<8x32xf32>
    %266 = arith.mulf %261, %263 : vector<8x32xf32>
    %267 = arith.addf %265, %266 : vector<8x32xf32>
    %268 = math.tanh %267 : vector<8x32xf32>
    %269 = arith.mulf %264, %268 : vector<8x32xf32>
    %270 = vector.extract_strided_slice %159 {offsets = [48, 0], sizes = [8, 128], strides = [1, 1]} : vector<64x128xf32> to vector<8x128xf32>
    %cst_46 = arith.constant dense<0.000000e+00> : vector<8x128xf32>
    %271 = tpu.matmul %269, %155, %cst_46 {dimension_numbers = #tpu.dot_dimension_numbers<[1], [0], [0], [1], [0, 0, 1, 1], [], []>} : vector<8x32xf32>, vector<32x128xf32>, vector<8x128xf32> -> vector<8x128xf32>
    %272 = arith.addf %270, %271 : vector<8x128xf32>
    %273 = arith.negf %272 : vector<8x128xf32>
    %274 = math.exp %273 : vector<8x128xf32>
    %cst_47 = arith.constant 1.000000e+00 : f32
    %275 = vector.broadcast %cst_47 : f32 to vector<8x128xf32>
    %276 = arith.addf %275, %274 : vector<8x128xf32>
    %277 = arith.divf %275, %276 : vector<8x128xf32>
    %278 = math.tanh %272 : vector<8x128xf32>
    %279 = vector.extract_strided_slice %277 {offsets = [0, 0], sizes = [8, 32], strides = [1, 1]} : vector<8x128xf32> to vector<8x32xf32>
    %280 = vector.extract_strided_slice %277 {offsets = [0, 32], sizes = [8, 32], strides = [1, 1]} : vector<8x128xf32> to vector<8x32xf32>
    %281 = vector.extract_strided_slice %278 {offsets = [0, 64], sizes = [8, 32], strides = [1, 1]} : vector<8x128xf32> to vector<8x32xf32>
    %282 = vector.extract_strided_slice %277 {offsets = [0, 96], sizes = [8, 32], strides = [1, 1]} : vector<8x128xf32> to vector<8x32xf32>
    %283 = arith.mulf %280, %267 : vector<8x32xf32>
    %284 = arith.mulf %279, %281 : vector<8x32xf32>
    %285 = arith.addf %283, %284 : vector<8x32xf32>
    %286 = math.tanh %285 : vector<8x32xf32>
    %287 = arith.mulf %282, %286 : vector<8x32xf32>
    %288 = vector.extract_strided_slice %159 {offsets = [56, 0], sizes = [8, 128], strides = [1, 1]} : vector<64x128xf32> to vector<8x128xf32>
    %cst_48 = arith.constant dense<0.000000e+00> : vector<8x128xf32>
    %289 = tpu.matmul %287, %155, %cst_48 {dimension_numbers = #tpu.dot_dimension_numbers<[1], [0], [0], [1], [0, 0, 1, 1], [], []>} : vector<8x32xf32>, vector<32x128xf32>, vector<8x128xf32> -> vector<8x128xf32>
    %290 = arith.addf %288, %289 : vector<8x128xf32>
    %291 = arith.negf %290 : vector<8x128xf32>
    %292 = math.exp %291 : vector<8x128xf32>
    %cst_49 = arith.constant 1.000000e+00 : f32
    %293 = vector.broadcast %cst_49 : f32 to vector<8x128xf32>
    %294 = arith.addf %293, %292 : vector<8x128xf32>
    %295 = arith.divf %293, %294 : vector<8x128xf32>
    %296 = math.tanh %290 : vector<8x128xf32>
    %297 = vector.extract_strided_slice %295 {offsets = [0, 0], sizes = [8, 32], strides = [1, 1]} : vector<8x128xf32> to vector<8x32xf32>
    %298 = vector.extract_strided_slice %295 {offsets = [0, 32], sizes = [8, 32], strides = [1, 1]} : vector<8x128xf32> to vector<8x32xf32>
    %299 = vector.extract_strided_slice %296 {offsets = [0, 64], sizes = [8, 32], strides = [1, 1]} : vector<8x128xf32> to vector<8x32xf32>
    %300 = vector.extract_strided_slice %295 {offsets = [0, 96], sizes = [8, 32], strides = [1, 1]} : vector<8x128xf32> to vector<8x32xf32>
    %301 = arith.mulf %298, %285 : vector<8x32xf32>
    %302 = arith.mulf %297, %299 : vector<8x32xf32>
    %303 = arith.addf %301, %302 : vector<8x32xf32>
    %304 = math.tanh %303 : vector<8x32xf32>
    %305 = arith.mulf %300, %304 : vector<8x32xf32>
    %306 = tpu.iota {dimensions = array<i32: 0>} : vector<8x32xi32>
    %c4_i32 = arith.constant 4 : i32
    %307 = vector.broadcast %c4_i32 : i32 to vector<8x32xi32>
    %308 = arith.cmpi slt, %306, %307 : vector<8x32xi32>
    %309 = arith.extui %308 : vector<8x32xi1> to vector<8x32xi32>
    %310 = arith.sitofp %309 : vector<8x32xi32> to vector<8x32xf32>
    %311 = arith.mulf %305, %310 : vector<8x32xf32>
    %cst_50 = arith.constant dense<0.000000e+00> : vector<32xf32>
    %312 = vector.multi_reduction <add>, %311, %cst_50 [0] : vector<8x32xf32> to vector<32xf32>
    %313 = vector.shape_cast %312 : vector<32xf32> to vector<1x32xf32>
    %cst_51 = arith.constant 2.500000e-01 : f32
    %314 = vector.broadcast %cst_51 : f32 to vector<1x32xf32>
    %315 = arith.mulf %313, %314 : vector<1x32xf32>
    %316 = vector.broadcast %315 : vector<1x32xf32> to vector<8x32xf32>
    %317 = arith.subf %305, %316 : vector<8x32xf32>
    %318 = arith.mulf %317, %310 : vector<8x32xf32>
    %319 = arith.mulf %318, %318 : vector<8x32xf32>
    %cst_52 = arith.constant dense<0.000000e+00> : vector<32xf32>
    %320 = vector.multi_reduction <add>, %319, %cst_52 [0] : vector<8x32xf32> to vector<32xf32>
    %321 = vector.shape_cast %320 : vector<32xf32> to vector<1x32xf32>
    %cst_53 = arith.constant 2.500000e-01 : f32
    %322 = vector.broadcast %cst_53 : f32 to vector<1x32xf32>
    %323 = arith.mulf %321, %322 : vector<1x32xf32>
    %324 = vector.broadcast %315 : vector<1x32xf32> to vector<8x32xf32>
    %325 = arith.subf %305, %324 : vector<8x32xf32>
    %cst_54 = arith.constant 9.99999974E-6 : f32
    %326 = vector.broadcast %cst_54 : f32 to vector<1x32xf32>
    %327 = arith.addf %323, %326 : vector<1x32xf32>
    %328 = math.rsqrt %327 : vector<1x32xf32>
    %329 = vector.broadcast %328 : vector<1x32xf32> to vector<8x32xf32>
    %330 = arith.mulf %325, %329 : vector<8x32xf32>
    %c0_55 = arith.constant 0 : index
    %c0_56 = arith.constant 0 : index
    %331 = vector.load %arg7[%c0_55, %c0_56] : memref<1x32xf32, #tpu.memory_space<vmem>>, vector<1x32xf32>
    %332 = vector.broadcast %331 : vector<1x32xf32> to vector<8x32xf32>
    %333 = arith.mulf %330, %332 : vector<8x32xf32>
    %c0_57 = arith.constant 0 : index
    %c0_58 = arith.constant 0 : index
    %334 = vector.load %arg8[%c0_57, %c0_58] : memref<1x32xf32, #tpu.memory_space<vmem>>, vector<1x32xf32>
    %335 = vector.broadcast %334 : vector<1x32xf32> to vector<8x32xf32>
    %336 = arith.addf %333, %335 : vector<8x32xf32>
    %c0_59 = arith.constant 0 : index
    %c0_60 = arith.constant 0 : index
    %337 = vector.load %arg9[%c0_59, %c0_60] : memref<1x32xf32, #tpu.memory_space<vmem>>, vector<1x32xf32>
    %338 = vector.broadcast %337 : vector<1x32xf32> to vector<8x32xf32>
    %339 = arith.mulf %336, %338 : vector<8x32xf32>
    %cst_61 = arith.constant dense<0.000000e+00> : vector<8xf32>
    %340 = vector.multi_reduction <add>, %339, %cst_61 [1] : vector<8x32xf32> to vector<8xf32>
    %341 = vector.shape_cast %340 : vector<8xf32> to vector<8x1xf32>
    %c0_62 = arith.constant 0 : index
    %c0_63 = arith.constant 0 : index
    %342 = vector.load %arg10[%c0_62, %c0_63] : memref<1x1xf32, #tpu.memory_space<vmem>>, vector<1x1xf32>
    %343 = vector.broadcast %342 : vector<1x1xf32> to vector<8x1xf32>
    %344 = arith.addf %341, %343 : vector<8x1xf32>
    %c0_64 = arith.constant 0 : index
    %c0_65 = arith.constant 0 : index
    %345 = vector.load %arg11[%c0_64, %c0_65] : memref<8x1xf32, #tpu.memory_space<vmem>>, vector<8x1xf32>
    tpu.vector_store %arg11[%c0_64, %c0_65], %344 {strides = array<i32>} : memref<8x1xf32, #tpu.memory_space<vmem>>, vector<8x1xf32>,
    return
  }
}

</mosaic_0001>

<llo_original>
// kernel: lstm_model_forward.1
$region0: #{lstm_model_forward.1}
  #allocation0 [shape = 'u32[]', space=smem, size = 0x4, offset = 0x4, fixed_abs, tag = 'smem constant byte address 0x4 - core index']
  #allocation1 [shape = 'u32[144,128]{1,0:T(1,128)}', space=vmem, size = 0x12000, scoped, tag = 'internal scratch']
  #allocation2 [shape = 'f32[1,1]{1,0:T(1,128)S(1)}', space=vmem, size = 0x200, scoped, tag = 'scoped memory for lstm_model_forward.1']
  %s0 = inlined_call_operand.vmem [shape: f32[64,8], index: 0, kind: input, shape index: {}]
  %s1 = inlined_call_operand.vmem [shape: f32[8,128], index: 1, kind: input, shape index: {}]
  %s2 = inlined_call_operand.vmem [shape: f32[32,128], index: 2, kind: input, shape index: {}]
  %s3 = inlined_call_operand.vmem [shape: f32[1,128], index: 3, kind: input, shape index: {}]
  %s4 = inlined_call_operand.vmem [shape: f32[32,128], index: 4, kind: input, shape index: {}]
  %s5 = inlined_call_operand.vmem [shape: f32[32,128], index: 5, kind: input, shape index: {}]
  %s6 = inlined_call_operand.vmem [shape: f32[1,128], index: 6, kind: input, shape index: {}]
  %s7 = inlined_call_operand.vmem [shape: f32[1,32], index: 7, kind: input, shape index: {}]
  %s8 = inlined_call_operand.vmem [shape: f32[1,32], index: 8, kind: input, shape index: {}]
  %s9 = inlined_call_operand.vmem [shape: f32[1,32], index: 9, kind: input, shape index: {}]
  %s10 = inlined_call_operand.<no memory space> [shape: f32[1,1], index: 10, kind: input, shape index: {}]
  %s11 = inlined_call_operand.vmem [shape: f32[8,1], index: 11, kind: output, shape index: {}]
  %s12 = sld [smem:[#allocation0]]
  $region54: #{lstm_model_forward.1} parent=0
    _
  %s14 = ssub.s32 1, %s12
  %s15 = scalar_select 0, %s14, %s12
  %v16 = vstv %s10
  %17 = vst [vmem:[#allocation2] sm:$0x1] %v16
  // Predicated region
  $region2: #{lstm_model_forward.1} parent=0 // pred_check
    _
  $region3: #{lstm_model_forward.1} parent=0 // pred_check_branch
    %19 = sbr.rel (0) target = $region5
  $region4: #{lstm_model_forward.1} parent=0 // pred_region
    _
  $region5: #{lstm_model_forward.1} parent=0 // pred_fallthru
    _
  // Predicated region
  $region6: #{lstm_model_forward.1} parent=0 // pred_check
    _
  $region7: #{lstm_model_forward.1} parent=0 // pred_check_branch
    %21 = sbr.rel (0) target = $region9
  $region8: #{lstm_model_forward.1} parent=0 // pred_region
    _
  $region9: #{lstm_model_forward.1} parent=0 // pred_fallthru
    _
  // Predicated region
  $region10: #{lstm_model_forward.1} parent=0 // pred_check
    _
  $region11: #{lstm_model_forward.1} parent=0 // pred_check_branch
    %23 = sbr.rel (0) target = $region13
  $region12: #{lstm_model_forward.1} parent=0 // pred_region
    _
  $region13: #{lstm_model_forward.1} parent=0 // pred_fallthru
    _
  // Predicated region
  $region14: #{lstm_model_forward.1} parent=0 // pred_check
    _
  $region15: #{lstm_model_forward.1} parent=0 // pred_check_branch
    %25 = sbr.rel (0) target = $region17
  $region16: #{lstm_model_forward.1} parent=0 // pred_region
    _
  $region17: #{lstm_model_forward.1} parent=0 // pred_fallthru
    _
  // Predicated region
  $region18: #{lstm_model_forward.1} parent=0 // pred_check
    _
  $region19: #{lstm_model_forward.1} parent=0 // pred_check_branch
    %27 = sbr.rel (0) target = $region21
  $region20: #{lstm_model_forward.1} parent=0 // pred_region
    _
  $region21: #{lstm_model_forward.1} parent=0 // pred_fallthru
    _
  // Predicated region
  $region22: #{lstm_model_forward.1} parent=0 // pred_check
    _
  $region23: #{lstm_model_forward.1} parent=0 // pred_check_branch
    %29 = sbr.rel (0) target = $region25
  $region24: #{lstm_model_forward.1} parent=0 // pred_region
    _
  $region25: #{lstm_model_forward.1} parent=0 // pred_fallthru
    _
  // Predicated region
  $region26: #{lstm_model_forward.1} parent=0 // pred_check
    _
  $region27: #{lstm_model_forward.1} parent=0 // pred_check_branch
    %31 = sbr.rel (0) target = $region29
  $region28: #{lstm_model_forward.1} parent=0 // pred_region
    _
  $region29: #{lstm_model_forward.1} parent=0 // pred_fallthru
    _
  // Predicated region
  $region30: #{lstm_model_forward.1} parent=0 // pred_check
    _
  $region31: #{lstm_model_forward.1} parent=0 // pred_check_branch
    %33 = sbr.rel (0) target = $region33
  $region32: #{lstm_model_forward.1} parent=0 // pred_region
    _
  $region33: #{lstm_model_forward.1} parent=0 // pred_fallthru
    _
  // Predicated region
  $region34: #{lstm_model_forward.1} parent=0 // pred_check
    _
  $region35: #{lstm_model_forward.1} parent=0 // pred_check_branch
    %35 = sbr.rel (0) target = $region37
  $region36: #{lstm_model_forward.1} parent=0 // pred_region
    _
  $region37: #{lstm_model_forward.1} parent=0 // pred_fallthru
    _
  // Predicated region
  $region38: #{lstm_model_forward.1} parent=0 // pred_check
    _
  $region39: #{lstm_model_forward.1} parent=0 // pred_check_branch
    %37 = sbr.rel (0) target = $region41
  $region40: #{lstm_model_forward.1} parent=0 // pred_region
    _
  $region41: #{lstm_model_forward.1} parent=0 // pred_fallthru
    _
  // Predicated region
  $region42: #{lstm_model_forward.1} parent=0 // pred_check
    _
  $region43: #{lstm_model_forward.1} parent=0 // pred_check_branch
    %39 = sbr.rel (0) target = $region45
  $region44: #{lstm_model_forward.1} parent=0 // pred_region
    _
  $region45: #{lstm_model_forward.1} parent=0 // pred_fallthru
    _
  %v40 = vld [vmem:[%s0] sm:$0xff]
  %v41 = vld [vmem:[%s0 + $0x8] sm:$0xff]
  %v42 = vld [vmem:[%s0 + $0x10] sm:$0xff]
  %v43 = vld [vmem:[%s0 + $0x18] sm:$0xff]
  %v44 = vld [vmem:[%s0 + $0x20] sm:$0xff]
  %v45 = vld [vmem:[%s0 + $0x28] sm:$0xff]
  %v46 = vld [vmem:[%s0 + $0x30] sm:$0xff]
  %v47 = vld [vmem:[%s0 + $0x38] sm:$0xff]
  %v48 = vld [vmem:[%s1] sm:$0xff]
  %v49 = vld [vmem:[%s2] sm:$0xff]
  %v50 = vld [vmem:[%s2 + $0x8] sm:$0xff]
  %v51 = vld [vmem:[%s2 + $0x10] sm:$0xff]
  %v52 = vld [vmem:[%s2 + $0x18] sm:$0xff]
  %v53 = vld [vmem:[%s3] sm:$0x1]
  %v55 = vlaneseq
  %v56 = vshrl.u32 %v55, 7
  %v57 = vsub.s32 0, %v56
  %v58 = vrot.slane %v53, %v57
  %vm60 = vcmask 64512
  %v62 = vsel %vm60, %v40, 0
  %v65 = vsel %vm60, %v41, 0
  %v68 = vsel %vm60, %v42, 0
  %v71 = vsel %vm60, %v43, 0
  %v74 = vsel %vm60, %v44, 0
  %v77 = vsel %vm60, %v45, 0
  %v80 = vsel %vm60, %v46, 0
  %v83 = vsel %vm60, %v47, 0
  %85 = vmatprep.subr.mxu0 0.0
  %86 = vmatpush1.msra.mxu0 0.0
  %87 = vmatprep.subr.mxu0 0.0
  %88 = vmatpush1.msra.mxu0 0.0
  %89 = vmatprep.subr.mxu0 0.0
  %90 = vmatpush1.msra.mxu0 0.0
  %91 = vmatprep.subr.mxu0 0.0
  %92 = vmatpush1.msra.mxu0 0.0
  %93 = vmatprep.subr.mxu0 0.0
  %94 = vmatpush1.msra.mxu0 0.0
  %95 = vmatprep.subr.mxu0 0.0
  %96 = vmatpush1.msra.mxu0 0.0
  %97 = vmatprep.subr.mxu0 0.0
  %98 = vmatpush1.msra.mxu0 0.0
  %99 = vmatprep.subr.mxu0 0.0
  %100 = vmatpush1.msra.mxu0 0.0
  %101 = vmatprep.subr.mxu0 0.0
  %102 = vmatpush1.msra.mxu0 0.0
  %103 = vmatprep.subr.mxu0 0.0
  %104 = vmatpush1.msra.mxu0 0.0
  %105 = vmatprep.subr.mxu0 0.0
  %106 = vmatpush1.msra.mxu0 0.0
  %107 = vmatprep.subr.mxu0 0.0
  %108 = vmatpush1.msra.mxu0 0.0
  %109 = vmatprep.subr.mxu0 0.0
  %110 = vmatpush1.msra.mxu0 0.0
  %111 = vmatprep.subr.mxu0 0.0
  %112 = vmatpush1.msra.mxu0 0.0
  %113 = vmatprep.subr.mxu0 0.0
  %114 = vmatpush1.msra.mxu0 0.0
  %115 = vmatprep.subr.mxu0 0.0
  %116 = vmatpush1.msra.mxu0 %v48
  %117 = vmatprep.subr.mxu0 0.0
  %118 = vmatpush2.msra.mxu0 0.0
  %119 = vmatprep.subr.mxu0 0.0
  %120 = vmatpush2.msra.mxu0 0.0
  %121 = vmatprep.subr.mxu0 0.0
  %122 = vmatpush2.msra.mxu0 0.0
  %123 = vmatprep.subr.mxu0 0.0
  %124 = vmatpush2.msra.mxu0 0.0
  %125 = vmatprep.subr.mxu0 0.0
  %126 = vmatpush2.msra.mxu0 0.0
  %127 = vmatprep.subr.mxu0 0.0
  %128 = vmatpush2.msra.mxu0 0.0
  %129 = vmatprep.subr.mxu0 0.0
  %130 = vmatpush2.msra.mxu0 0.0
  %131 = vmatprep.subr.mxu0 0.0
  %132 = vmatpush2.msra.mxu0 0.0
  %133 = vmatprep.subr.mxu0 0.0
  %134 = vmatpush2.msra.mxu0 0.0
  %135 = vmatprep.subr.mxu0 0.0
  %136 = vmatpush2.msra.mxu0 0.0
  %137 = vmatprep.subr.mxu0 0.0
  %138 = vmatpush2.msra.mxu0 0.0
  %139 = vmatprep.subr.mxu0 0.0
  %140 = vmatpush2.msra.mxu0 0.0
  %141 = vmatprep.subr.mxu0 0.0
  %142 = vmatpush2.msra.mxu0 0.0
  %143 = vmatprep.subr.mxu0 0.0
  %144 = vmatpush2.msra.mxu0 0.0
  %145 = vmatprep.subr.mxu0 0.0
  %146 = vmatpush2.msra.mxu0 0.0
  %147 = vmatprep.subr.mxu0 0.0
  %148 = vmatpush2.msra.mxu0 0.0
  %149 = vmatprep.mubr.f32.mxu0 0.0
  %150 = vmatmul.mubr.f32.gmra.mxu0 %v62
  %v151 = vpop.f32.mrf.mxu0
  %v152 = vadd.f32 %v58, %v151
  %v153 = vpop.f32.mrf.mxu0
  %154 = vmatprep.mubr.f32.mxu0 0.0
  %155 = vmatmul.mubr.f32.gmra.mxu0 %v65
  %v156 = vpop.f32.mrf.mxu0
  %v157 = vadd.f32 %v58, %v156
  %v158 = vpop.f32.mrf.mxu0
  %159 = vmatprep.mubr.f32.mxu0 0.0
  %160 = vmatmul.mubr.f32.gmra.mxu0 %v68
  %v161 = vpop.f32.mrf.mxu0
  %v162 = vadd.f32 %v58, %v161
  %v163 = vpop.f32.mrf.mxu0
  %164 = vmatprep.mubr.f32.mxu0 0.0
  %165 = vmatmul.mubr.f32.gmra.mxu0 %v71
  %v166 = vpop.f32.mrf.mxu0
  %v167 = vadd.f32 %v58, %v166
  %v168 = vpop.f32.mrf.mxu0
  %169 = vmatprep.mubr.f32.mxu0 0.0
  %170 = vmatmul.mubr.f32.gmra.mxu0 %v74
  %v171 = vpop.f32.mrf.mxu0
  %v172 = vadd.f32 %v58, %v171
  %v173 = vpop.f32.mrf.mxu0
  %174 = vmatprep.mubr.f32.mxu0 0.0
  %175 = vmatmul.mubr.f32.gmra.mxu0 %v77
  %v176 = vpop.f32.mrf.mxu0
  %v177 = vadd.f32 %v58, %v176
  %v178 = vpop.f32.mrf.mxu0
  %179 = vmatprep.mubr.f32.mxu0 0.0
  %180 = vmatmul.mubr.f32.gmra.mxu0 %v80
  %v181 = vpop.f32.mrf.mxu0
  %v182 = vadd.f32 %v58, %v181
  %v183 = vpop.f32.mrf.mxu0
  %184 = vmatprep.mubr.f32.mxu0 0.0
  %185 = vmatmul.mubr.f32.gmra.mxu0 %v83
  %v186 = vpop.f32.mrf.mxu0
  %v187 = vadd.f32 %v58, %v186
  %v188 = vpop.f32.mrf.mxu0
  %189 = vdwg.mxu0
  %vm190 = vcmask 261120
  %v192 = vsel %vm190, 0.0, 0
  %194 = vmatprep.subr.mxu0 0.0
  %195 = vmatpush1.msra.mxu0 0.0
  %196 = vmatprep.subr.mxu0 0.0
  %197 = vmatpush1.msra.mxu0 0.0
  %198 = vmatprep.subr.mxu0 0.0
  %199 = vmatpush1.msra.mxu0 0.0
  %200 = vmatprep.subr.mxu0 0.0
  %201 = vmatpush1.msra.mxu0 0.0
  %202 = vmatprep.subr.mxu0 0.0
  %203 = vmatpush1.msra.mxu0 0.0
  %204 = vmatprep.subr.mxu0 0.0
  %205 = vmatpush1.msra.mxu0 0.0
  %206 = vmatprep.subr.mxu0 0.0
  %207 = vmatpush1.msra.mxu0 0.0
  %208 = vmatprep.subr.mxu0 0.0
  %209 = vmatpush1.msra.mxu0 0.0
  %210 = vmatprep.subr.mxu0 0.0
  %211 = vmatpush1.msra.mxu0 0.0
  %212 = vmatprep.subr.mxu0 0.0
  %213 = vmatpush1.msra.mxu0 0.0
  %214 = vmatprep.subr.mxu0 0.0
  %215 = vmatpush1.msra.mxu0 0.0
  %216 = vmatprep.subr.mxu0 0.0
  %217 = vmatpush1.msra.mxu0 0.0
  %218 = vmatprep.subr.mxu0 0.0
  %219 = vmatpush1.msra.mxu0 %v52
  %220 = vmatprep.subr.mxu0 0.0
  %221 = vmatpush1.msra.mxu0 %v51
  %222 = vmatprep.subr.mxu0 0.0
  %223 = vmatpush1.msra.mxu0 %v50
  %224 = vmatprep.subr.mxu0 0.0
  %225 = vmatpush1.msra.mxu0 %v49
  %226 = vmatprep.subr.mxu0 0.0
  %227 = vmatpush2.msra.mxu0 0.0
  %228 = vmatprep.subr.mxu0 0.0
  %229 = vmatpush2.msra.mxu0 0.0
  %230 = vmatprep.subr.mxu0 0.0
  %231 = vmatpush2.msra.mxu0 0.0
  %232 = vmatprep.subr.mxu0 0.0
  %233 = vmatpush2.msra.mxu0 0.0
  %234 = vmatprep.subr.mxu0 0.0
  %235 = vmatpush2.msra.mxu0 0.0
  %236 = vmatprep.subr.mxu0 0.0
  %237 = vmatpush2.msra.mxu0 0.0
  %238 = vmatprep.subr.mxu0 0.0
  %239 = vmatpush2.msra.mxu0 0.0
  %240 = vmatprep.subr.mxu0 0.0
  %241 = vmatpush2.msra.mxu0 0.0
  %242 = vmatprep.subr.mxu0 0.0
  %243 = vmatpush2.msra.mxu0 0.0
  %244 = vmatprep.subr.mxu0 0.0
  %245 = vmatpush2.msra.mxu0 0.0
  %246 = vmatprep.subr.mxu0 0.0
  %247 = vmatpush2.msra.mxu0 0.0
  %248 = vmatprep.subr.mxu0 0.0
  %249 = vmatpush2.msra.mxu0 0.0
  %250 = vmatprep.subr.mxu0 0.0
  %251 = vmatpush2.msra.mxu0 0.0
  %252 = vmatprep.subr.mxu0 0.0
  %253 = vmatpush2.msra.mxu0 0.0
  %254 = vmatprep.subr.mxu0 0.0
  %255 = vmatpush2.msra.mxu0 0.0
  %256 = vmatprep.subr.mxu0 0.0
  %257 = vmatpush2.msra.mxu0 0.0
  %258 = vmatprep.mubr.f32.mxu0 0.0
  %259 = vmatmul.mubr.f32.gmra.mxu0 %v192
  %v260 = vpop.f32.mrf.mxu0
  %v261 = vadd.f32 0.0, %v260
  %v262 = vpop.f32.mrf.mxu0
  %263 = vdwg.mxu0
  %v264 = vadd.f32 %v152, %v261
  %v265 = vxor.u32 %v264, 2147483648
  %v266 = vmul.f32 %v265, 1.442695
  %v267 = vpow.pop %v266
  %v268 = vadd.f32 %v267, 1.0
  %v269 = vrcp.pop %v268
  %v270 = vmul.f32 1.0, %v269
  %v271 = vtanh.pop %v264
  %v272 = vmul.f32 %v270, 0.0
  %274 = vrot.lane.b32.xlu0 %v271, 64
  %v275 = vpop.permute.xlu0 %274
  %v277 = vmul.f32 %v270, %v275
  %279 = vrot.lane.b32.xlu0 %v277, 32
  %v280 = vpop.permute.xlu0 %279
  %v282 = vadd.f32 %v272, %v280
  %v283 = vtanh.pop %v282
  %285 = vrot.lane.b32.xlu0 %v283, 64
  %v286 = vpop.permute.xlu0 %285
  %v288 = vmul.f32 %v270, %v286
  %290 = vrot.lane.b32.xlu0 %v288, 32
  %v291 = vpop.permute.xlu0 %290
  %v292 = vsel %vm190, %v291, 0
  %294 = vmatprep.subr.mxu0 0.0
  %295 = vmatpush1.msra.mxu0 0.0
  %296 = vmatprep.subr.mxu0 0.0
  %297 = vmatpush1.msra.mxu0 0.0
  %298 = vmatprep.subr.mxu0 0.0
  %299 = vmatpush1.msra.mxu0 0.0
  %300 = vmatprep.subr.mxu0 0.0
  %301 = vmatpush1.msra.mxu0 0.0
  %302 = vmatprep.subr.mxu0 0.0
  %303 = vmatpush1.msra.mxu0 0.0
  %304 = vmatprep.subr.mxu0 0.0
  %305 = vmatpush1.msra.mxu0 0.0
  %306 = vmatprep.subr.mxu0 0.0
  %307 = vmatpush1.msra.mxu0 0.0
  %308 = vmatprep.subr.mxu0 0.0
  %309 = vmatpush1.msra.mxu0 0.0
  %310 = vmatprep.subr.mxu0 0.0
  %311 = vmatpush1.msra.mxu0 0.0
  %312 = vmatprep.subr.mxu0 0.0
  %313 = vmatpush1.msra.mxu0 0.0
  %314 = vmatprep.subr.mxu0 0.0
  %315 = vmatpush1.msra.mxu0 0.0
  %316 = vmatprep.subr.mxu0 0.0
  %317 = vmatpush1.msra.mxu0 0.0
  %318 = vmatprep.subr.mxu0 0.0
  %319 = vmatpush1.msra.mxu0 %v52
  %320 = vmatprep.subr.mxu0 0.0
  %321 = vmatpush1.msra.mxu0 %v51
  %322 = vmatprep.subr.mxu0 0.0
  %323 = vmatpush1.msra.mxu0 %v50
  %324 = vmatprep.subr.mxu0 0.0
  %325 = vmatpush1.msra.mxu0 %v49
  %326 = vmatprep.subr.mxu0 0.0
  %327 = vmatpush2.msra.mxu0 0.0
  %328 = vmatprep.subr.mxu0 0.0
  %329 = vmatpush2.msra.mxu0 0.0
  %330 = vmatprep.subr.mxu0 0.0
  %331 = vmatpush2.msra.mxu0 0.0
  %332 = vmatprep.subr.mxu0 0.0
  %333 = vmatpush2.msra.mxu0 0.0
  %334 = vmatprep.subr.mxu0 0.0
  %335 = vmatpush2.msra.mxu0 0.0
  %336 = vmatprep.subr.mxu0 0.0
  %337 = vmatpush2.msra.mxu0 0.0
  %338 = vmatprep.subr.mxu0 0.0
  %339 = vmatpush2.msra.mxu0 0.0
  %340 = vmatprep.subr.mxu0 0.0
  %341 = vmatpush2.msra.mxu0 0.0
  %342 = vmatprep.subr.mxu0 0.0
  %343 = vmatpush2.msra.mxu0 0.0
  %344 = vmatprep.subr.mxu0 0.0
  %345 = vmatpush2.msra.mxu0 0.0
  %346 = vmatprep.subr.mxu0 0.0
  %347 = vmatpush2.msra.mxu0 0.0
  %348 = vmatprep.subr.mxu0 0.0
  %349 = vmatpush2.msra.mxu0 0.0
  %350 = vmatprep.subr.mxu0 0.0
  %351 = vmatpush2.msra.mxu0 0.0
  %352 = vmatprep.subr.mxu0 0.0
  %353 = vmatpush2.msra.mxu0 0.0
  %354 = vmatprep.subr.mxu0 0.0
  %355 = vmatpush2.msra.mxu0 0.0
  %356 = vmatprep.subr.mxu0 0.0
  %357 = vmatpush2.msra.mxu0 0.0
  %358 = vmatprep.mubr.f32.mxu0 0.0
  %359 = vmatmul.mubr.f32.gmra.mxu0 %v292
  %v360 = vpop.f32.mrf.mxu0
  %v361 = vadd.f32 0.0, %v360
  %v362 = vpop.f32.mrf.mxu0
  %363 = vdwg.mxu0
  %v364 = vadd.f32 %v157, %v361
  %v365 = vxor.u32 %v364, 2147483648
  %v366 = vmul.f32 %v365, 1.442695
  %v367 = vpow.pop %v366
  %v368 = vadd.f32 %v367, 1.0
  %v369 = vrcp.pop %v368
  %v370 = vmul.f32 1.0, %v369
  %v371 = vtanh.pop %v364
  %v372 = vmul.f32 %v370, %v282
  %374 = vrot.lane.b32.xlu0 %v371, 64
  %v375 = vpop.permute.xlu0 %374
  %v377 = vmul.f32 %v370, %v375
  %379 = vrot.lane.b32.xlu0 %v377, 32
  %v380 = vpop.permute.xlu0 %379
  %v382 = vadd.f32 %v372, %v380
  %v383 = vtanh.pop %v382
  %385 = vrot.lane.b32.xlu0 %v383, 64
  %v386 = vpop.permute.xlu0 %385
  %v388 = vmul.f32 %v370, %v386
  %390 = vrot.lane.b32.xlu0 %v388, 32
  %v391 = vpop.permute.xlu0 %390
  %v392 = vsel %vm190, %v391, 0
  %394 = vmatprep.subr.mxu0 0.0
  %395 = vmatpush1.msra.mxu0 0.0
  %396 = vmatprep.subr.mxu0 0.0
  %397 = vmatpush1.msra.mxu0 0.0
  %398 = vmatprep.subr.mxu0 0.0
  %399 = vmatpush1.msra.mxu0 0.0
  %400 = vmatprep.subr.mxu0 0.0
  %401 = vmatpush1.msra.mxu0 0.0
  %402 = vmatprep.subr.mxu0 0.0
  %403 = vmatpush1.msra.mxu0 0.0
  %404 = vmatprep.subr.mxu0 0.0
  %405 = vmatpush1.msra.mxu0 0.0
  %406 = vmatprep.subr.mxu0 0.0
  %407 = vmatpush1.msra.mxu0 0.0
  %408 = vmatprep.subr.mxu0 0.0
  %409 = vmatpush1.msra.mxu0 0.0
  %410 = vmatprep.subr.mxu0 0.0
  %411 = vmatpush1.msra.mxu0 0.0
  %412 = vmatprep.subr.mxu0 0.0
  %413 = vmatpush1.msra.mxu0 0.0
  %414 = vmatprep.subr.mxu0 0.0
  %415 = vmatpush1.msra.mxu0 0.0
  %416 = vmatprep.subr.mxu0 0.0
  %417 = vmatpush1.msra.mxu0 0.0
  %418 = vmatprep.subr.mxu0 0.0
  %419 = vmatpush1.msra.mxu0 %v52
  %420 = vmatprep.subr.mxu0 0.0
  %421 = vmatpush1.msra.mxu0 %v51
  %422 = vmatprep.subr.mxu0 0.0
  %423 = vmatpush1.msra.mxu0 %v50
  %424 = vmatprep.subr.mxu0 0.0
  %425 = vmatpush1.msra.mxu0 %v49
  %426 = vmatprep.subr.mxu0 0.0
  %427 = vmatpush2.msra.mxu0 0.0
  %428 = vmatprep.subr.mxu0 0.0
  %429 = vmatpush2.msra.mxu0 0.0
  %430 = vmatprep.subr.mxu0 0.0
  %431 = vmatpush2.msra.mxu0 0.0
  %432 = vmatprep.subr.mxu0 0.0
  %433 = vmatpush2.msra.mxu0 0.0
  %434 = vmatprep.subr.mxu0 0.0
  %435 = vmatpush2.msra.mxu0 0.0
  %436 = vmatprep.subr.mxu0 0.0
  %437 = vmatpush2.msra.mxu0 0.0
  %438 = vmatprep.subr.mxu0 0.0
  %439 = vmatpush2.msra.mxu0 0.0
  %440 = vmatprep.subr.mxu0 0.0
  %441 = vmatpush2.msra.mxu0 0.0
  %442 = vmatprep.subr.mxu0 0.0
  %443 = vmatpush2.msra.mxu0 0.0
  %444 = vmatprep.subr.mxu0 0.0
  %445 = vmatpush2.msra.mxu0 0.0
  %446 = vmatprep.subr.mxu0 0.0
  %447 = vmatpush2.msra.mxu0 0.0
  %448 = vmatprep.subr.mxu0 0.0
  %449 = vmatpush2.msra.mxu0 0.0
  %450 = vmatprep.subr.mxu0 0.0
  %451 = vmatpush2.msra.mxu0 0.0
  %452 = vmatprep.subr.mxu0 0.0
  %453 = vmatpush2.msra.mxu0 0.0
  %454 = vmatprep.subr.mxu0 0.0
  %455 = vmatpush2.msra.mxu0 0.0
  %456 = vmatprep.subr.mxu0 0.0
  %457 = vmatpush2.msra.mxu0 0.0
  %458 = vmatprep.mubr.f32.mxu0 0.0
  %459 = vmatmul.mubr.f32.gmra.mxu0 %v392
  %v460 = vpop.f32.mrf.mxu0
  %v461 = vadd.f32 0.0, %v460
  %v462 = vpop.f32.mrf.mxu0
  %463 = vdwg.mxu0
  %v464 = vadd.f32 %v162, %v461
  %v465 = vxor.u32 %v464, 2147483648
  %v466 = vmul.f32 %v465, 1.442695
  %v467 = vpow.pop %v466
  %v468 = vadd.f32 %v467, 1.0
  %v469 = vrcp.pop %v468
  %v470 = vmul.f32 1.0, %v469
  %v471 = vtanh.pop %v464
  %v472 = vmul.f32 %v470, %v382
  %474 = vrot.lane.b32.xlu0 %v471, 64
  %v475 = vpop.permute.xlu0 %474
  %v477 = vmul.f32 %v470, %v475
  %479 = vrot.lane.b32.xlu0 %v477, 32
  %v480 = vpop.permute.xlu0 %479
  %v482 = vadd.f32 %v472, %v480
  %v483 = vtanh.pop %v482
  %485 = vrot.lane.b32.xlu0 %v483, 64
  %v486 = vpop.permute.xlu0 %485
  %v488 = vmul.f32 %v470, %v486
  %490 = vrot.lane.b32.xlu0 %v488, 32
  %v491 = vpop.permute.xlu0 %490
  %v492 = vsel %vm190, %v491, 0
  %494 = vmatprep.subr.mxu0 0.0
  %495 = vmatpush1.msra.mxu0 0.0
  %496 = vmatprep.subr.mxu0 0.0
  %497 = vmatpush1.msra.mxu0 0.0
  %498 = vmatprep.subr.mxu0 0.0
  %499 = vmatpush1.msra.mxu0 0.0
  %500 = vmatprep.subr.mxu0 0.0
  %501 = vmatpush1.msra.mxu0 0.0
  %502 = vmatprep.subr.mxu0 0.0
  %503 = vmatpush1.msra.mxu0 0.0
  %504 = vmatprep.subr.mxu0 0.0
  %505 = vmatpush1.msra.mxu0 0.0
  %506 = vmatprep.subr.mxu0 0.0
  %507 = vmatpush1.msra.mxu0 0.0
  %508 = vmatprep.subr.mxu0 0.0
  %509 = vmatpush1.msra.mxu0 0.0
  %510 = vmatprep.subr.mxu0 0.0
  %511 = vmatpush1.msra.mxu0 0.0
  %512 = vmatprep.subr.mxu0 0.0
  %513 = vmatpush1.msra.mxu0 0.0
  %514 = vmatprep.subr.mxu0 0.0
  %515 = vmatpush1.msra.mxu0 0.0
  %516 = vmatprep.subr.mxu0 0.0
  %517 = vmatpush1.msra.mxu0 0.0
  %518 = vmatprep.subr.mxu0 0.0
  %519 = vmatpush1.msra.mxu0 %v52
  %520 = vmatprep.subr.mxu0 0.0
  %521 = vmatpush1.msra.mxu0 %v51
  %522 = vmatprep.subr.mxu0 0.0
  %523 = vmatpush1.msra.mxu0 %v50
  %524 = vmatprep.subr.mxu0 0.0
  %525 = vmatpush1.msra.mxu0 %v49
  %526 = vmatprep.subr.mxu0 0.0
  %527 = vmatpush2.msra.mxu0 0.0
  %528 = vmatprep.subr.mxu0 0.0
  %529 = vmatpush2.msra.mxu0 0.0
  %530 = vmatprep.subr.mxu0 0.0
  %531 = vmatpush2.msra.mxu0 0.0
  %532 = vmatprep.subr.mxu0 0.0
  %533 = vmatpush2.msra.mxu0 0.0
  %534 = vmatprep.subr.mxu0 0.0
  %535 = vmatpush2.msra.mxu0 0.0
  %536 = vmatprep.subr.mxu0 0.0
  %537 = vmatpush2.msra.mxu0 0.0
  %538 = vmatprep.subr.mxu0 0.0
  %539 = vmatpush2.msra.mxu0 0.0
  %540 = vmatprep.subr.mxu0 0.0
  %541 = vmatpush2.msra.mxu0 0.0
  %542 = vmatprep.subr.mxu0 0.0
  %543 = vmatpush2.msra.mxu0 0.0
  %544 = vmatprep.subr.mxu0 0.0
  %545 = vmatpush2.msra.mxu0 0.0
  %546 = vmatprep.subr.mxu0 0.0
  %547 = vmatpush2.msra.mxu0 0.0
  %548 = vmatprep.subr.mxu0 0.0
  %549 = vmatpush2.msra.mxu0 0.0
  %550 = vmatprep.subr.mxu0 0.0
  %551 = vmatpush2.msra.mxu0 0.0
  %552 = vmatprep.subr.mxu0 0.0
  %553 = vmatpush2.msra.mxu0 0.0
  %554 = vmatprep.subr.mxu0 0.0
  %555 = vmatpush2.msra.mxu0 0.0
  %556 = vmatprep.subr.mxu0 0.0
  %557 = vmatpush2.msra.mxu0 0.0
  %558 = vmatprep.mubr.f32.mxu0 0.0
  %559 = vmatmul.mubr.f32.gmra.mxu0 %v492
  %v560 = vpop.f32.mrf.mxu0
  %v561 = vadd.f32 0.0, %v560
  %v562 = vpop.f32.mrf.mxu0
  %563 = vdwg.mxu0
  %v564 = vadd.f32 %v167, %v561
  %v565 = vxor.u32 %v564, 2147483648
  %v566 = vmul.f32 %v565, 1.442695
  %v567 = vpow.pop %v566
  %v568 = vadd.f32 %v567, 1.0
  %v569 = vrcp.pop %v568
  %v570 = vmul.f32 1.0, %v569
  %v571 = vtanh.pop %v564
  %v572 = vmul.f32 %v570, %v482
  %574 = vrot.lane.b32.xlu0 %v571, 64
  %v575 = vpop.permute.xlu0 %574
  %v577 = vmul.f32 %v570, %v575
  %579 = vrot.lane.b32.xlu0 %v577, 32
  %v580 = vpop.permute.xlu0 %579
  %v582 = vadd.f32 %v572, %v580
  %v583 = vtanh.pop %v582
  %585 = vrot.lane.b32.xlu0 %v583, 64
  %v586 = vpop.permute.xlu0 %585
  %v588 = vmul.f32 %v570, %v586
  %590 = vrot.lane.b32.xlu0 %v588, 32
  %v591 = vpop.permute.xlu0 %590
  %v592 = vsel %vm190, %v591, 0
  %594 = vmatprep.subr.mxu0 0.0
  %595 = vmatpush1.msra.mxu0 0.0
  %596 = vmatprep.subr.mxu0 0.0
  %597 = vmatpush1.msra.mxu0 0.0
  %598 = vmatprep.subr.mxu0 0.0
  %599 = vmatpush1.msra.mxu0 0.0
  %600 = vmatprep.subr.mxu0 0.0
  %601 = vmatpush1.msra.mxu0 0.0
  %602 = vmatprep.subr.mxu0 0.0
  %603 = vmatpush1.msra.mxu0 0.0
  %604 = vmatprep.subr.mxu0 0.0
  %605 = vmatpush1.msra.mxu0 0.0
  %606 = vmatprep.subr.mxu0 0.0
  %607 = vmatpush1.msra.mxu0 0.0
  %608 = vmatprep.subr.mxu0 0.0
  %609 = vmatpush1.msra.mxu0 0.0
  %610 = vmatprep.subr.mxu0 0.0
  %611 = vmatpush1.msra.mxu0 0.0
  %612 = vmatprep.subr.mxu0 0.0
  %613 = vmatpush1.msra.mxu0 0.0
  %614 = vmatprep.subr.mxu0 0.0
  %615 = vmatpush1.msra.mxu0 0.0
  %616 = vmatprep.subr.mxu0 0.0
  %617 = vmatpush1.msra.mxu0 0.0
  %618 = vmatprep.subr.mxu0 0.0
  %619 = vmatpush1.msra.mxu0 %v52
  %620 = vmatprep.subr.mxu0 0.0
  %621 = vmatpush1.msra.mxu0 %v51
  %622 = vmatprep.subr.mxu0 0.0
  %623 = vmatpush1.msra.mxu0 %v50
  %624 = vmatprep.subr.mxu0 0.0
  %625 = vmatpush1.msra.mxu0 %v49
  %626 = vmatprep.subr.mxu0 0.0
  %627 = vmatpush2.msra.mxu0 0.0
  %628 = vmatprep.subr.mxu0 0.0
  %629 = vmatpush2.msra.mxu0 0.0
  %630 = vmatprep.subr.mxu0 0.0
  %631 = vmatpush2.msra.mxu0 0.0
  %632 = vmatprep.subr.mxu0 0.0
  %633 = vmatpush2.msra.mxu0 0.0
  %634 = vmatprep.subr.mxu0 0.0
  %635 = vmatpush2.msra.mxu0 0.0
  %636 = vmatprep.subr.mxu0 0.0
  %637 = vmatpush2.msra.mxu0 0.0
  %638 = vmatprep.subr.mxu0 0.0
  %639 = vmatpush2.msra.mxu0 0.0
  %640 = vmatprep.subr.mxu0 0.0
  %641 = vmatpush2.msra.mxu0 0.0
  %642 = vmatprep.subr.mxu0 0.0
  %643 = vmatpush2.msra.mxu0 0.0
  %644 = vmatprep.subr.mxu0 0.0
  %645 = vmatpush2.msra.mxu0 0.0
  %646 = vmatprep.subr.mxu0 0.0
  %647 = vmatpush2.msra.mxu0 0.0
  %648 = vmatprep.subr.mxu0 0.0
  %649 = vmatpush2.msra.mxu0 0.0
  %650 = vmatprep.subr.mxu0 0.0
  %651 = vmatpush2.msra.mxu0 0.0
  %652 = vmatprep.subr.mxu0 0.0
  %653 = vmatpush2.msra.mxu0 0.0
  %654 = vmatprep.subr.mxu0 0.0
  %655 = vmatpush2.msra.mxu0 0.0
  %656 = vmatprep.subr.mxu0 0.0
  %657 = vmatpush2.msra.mxu0 0.0
  %658 = vmatprep.mubr.f32.mxu0 0.0
  %659 = vmatmul.mubr.f32.gmra.mxu0 %v592
  %v660 = vpop.f32.mrf.mxu0
  %v661 = vadd.f32 0.0, %v660
  %v662 = vpop.f32.mrf.mxu0
  %663 = vdwg.mxu0
  %v664 = vadd.f32 %v172, %v661
  %v665 = vxor.u32 %v664, 2147483648
  %v666 = vmul.f32 %v665, 1.442695
  %v667 = vpow.pop %v666
  %v668 = vadd.f32 %v667, 1.0
  %v669 = vrcp.pop %v668
  %v670 = vmul.f32 1.0, %v669
  %v671 = vtanh.pop %v664
  %v672 = vmul.f32 %v670, %v582
  %674 = vrot.lane.b32.xlu0 %v671, 64
  %v675 = vpop.permute.xlu0 %674
  %v677 = vmul.f32 %v670, %v675
  %679 = vrot.lane.b32.xlu0 %v677, 32
  %v680 = vpop.permute.xlu0 %679
  %v682 = vadd.f32 %v672, %v680
  %v683 = vtanh.pop %v682
  %685 = vrot.lane.b32.xlu0 %v683, 64
  %v686 = vpop.permute.xlu0 %685
  %v688 = vmul.f32 %v670, %v686
  %690 = vrot.lane.b32.xlu0 %v688, 32
  %v691 = vpop.permute.xlu0 %690
  %v692 = vsel %vm190, %v691, 0
  %694 = vmatprep.subr.mxu0 0.0
  %695 = vmatpush1.msra.mxu0 0.0
  %696 = vmatprep.subr.mxu0 0.0
  %697 = vmatpush1.msra.mxu0 0.0
  %698 = vmatprep.subr.mxu0 0.0
  %699 = vmatpush1.msra.mxu0 0.0
  %700 = vmatprep.subr.mxu0 0.0
  %701 = vmatpush1.msra.mxu0 0.0
  %702 = vmatprep.subr.mxu0 0.0
  %703 = vmatpush1.msra.mxu0 0.0
  %704 = vmatprep.subr.mxu0 0.0
  %705 = vmatpush1.msra.mxu0 0.0
  %706 = vmatprep.subr.mxu0 0.0
  %707 = vmatpush1.msra.mxu0 0.0
  %708 = vmatprep.subr.mxu0 0.0
  %709 = vmatpush1.msra.mxu0 0.0
  %710 = vmatprep.subr.mxu0 0.0
  %711 = vmatpush1.msra.mxu0 0.0
  %712 = vmatprep.subr.mxu0 0.0
  %713 = vmatpush1.msra.mxu0 0.0
  %714 = vmatprep.subr.mxu0 0.0
  %715 = vmatpush1.msra.mxu0 0.0
  %716 = vmatprep.subr.mxu0 0.0
  %717 = vmatpush1.msra.mxu0 0.0
  %718 = vmatprep.subr.mxu0 0.0
  %719 = vmatpush1.msra.mxu0 %v52
  %720 = vmatprep.subr.mxu0 0.0
  %721 = vmatpush1.msra.mxu0 %v51
  %722 = vmatprep.subr.mxu0 0.0
  %723 = vmatpush1.msra.mxu0 %v50
  %724 = vmatprep.subr.mxu0 0.0
  %725 = vmatpush1.msra.mxu0 %v49
  %726 = vmatprep.subr.mxu0 0.0
  %727 = vmatpush2.msra.mxu0 0.0
  %728 = vmatprep.subr.mxu0 0.0
  %729 = vmatpush2.msra.mxu0 0.0
  %730 = vmatprep.subr.mxu0 0.0
  %731 = vmatpush2.msra.mxu0 0.0
  %732 = vmatprep.subr.mxu0 0.0
  %733 = vmatpush2.msra.mxu0 0.0
  %734 = vmatprep.subr.mxu0 0.0
  %735 = vmatpush2.msra.mxu0 0.0
  %736 = vmatprep.subr.mxu0 0.0
  %737 = vmatpush2.msra.mxu0 0.0
  %738 = vmatprep.subr.mxu0 0.0
  %739 = vmatpush2.msra.mxu0 0.0
  %740 = vmatprep.subr.mxu0 0.0
  %741 = vmatpush2.msra.mxu0 0.0
  %742 = vmatprep.subr.mxu0 0.0
  %743 = vmatpush2.msra.mxu0 0.0
  %744 = vmatprep.subr.mxu0 0.0
  %745 = vmatpush2.msra.mxu0 0.0
  %746 = vmatprep.subr.mxu0 0.0
  %747 = vmatpush2.msra.mxu0 0.0
  %748 = vmatprep.subr.mxu0 0.0
  %749 = vmatpush2.msra.mxu0 0.0
  %750 = vmatprep.subr.mxu0 0.0
  %751 = vmatpush2.msra.mxu0 0.0
  %752 = vmatprep.subr.mxu0 0.0
  %753 = vmatpush2.msra.mxu0 0.0
  %754 = vmatprep.subr.mxu0 0.0
  %755 = vmatpush2.msra.mxu0 0.0
  %756 = vmatprep.subr.mxu0 0.0
  %757 = vmatpush2.msra.mxu0 0.0
  %758 = vmatprep.mubr.f32.mxu0 0.0
  %759 = vmatmul.mubr.f32.gmra.mxu0 %v692
  %v760 = vpop.f32.mrf.mxu0
  %v761 = vadd.f32 0.0, %v760
  %v762 = vpop.f32.mrf.mxu0
  %763 = vdwg.mxu0
  %v764 = vadd.f32 %v177, %v761
  %v765 = vxor.u32 %v764, 2147483648
  %v766 = vmul.f32 %v765, 1.442695
  %v767 = vpow.pop %v766
  %v768 = vadd.f32 %v767, 1.0
  %v769 = vrcp.pop %v768
  %v770 = vmul.f32 1.0, %v769
  %v771 = vtanh.pop %v764
  %v772 = vmul.f32 %v770, %v682
  %774 = vrot.lane.b32.xlu0 %v771, 64
  %v775 = vpop.permute.xlu0 %774
  %v777 = vmul.f32 %v770, %v775
  %779 = vrot.lane.b32.xlu0 %v777, 32
  %v780 = vpop.permute.xlu0 %779
  %v782 = vadd.f32 %v772, %v780
  %v783 = vtanh.pop %v782
  %785 = vrot.lane.b32.xlu0 %v783, 64
  %v786 = vpop.permute.xlu0 %785
  %v788 = vmul.f32 %v770, %v786
  %790 = vrot.lane.b32.xlu0 %v788, 32
  %v791 = vpop.permute.xlu0 %790
  %v792 = vsel %vm190, %v791, 0
  %794 = vmatprep.subr.mxu0 0.0
  %795 = vmatpush1.msra.mxu0 0.0
  %796 = vmatprep.subr.mxu0 0.0
  %797 = vmatpush1.msra.mxu0 0.0
  %798 = vmatprep.subr.mxu0 0.0
  %799 = vmatpush1.msra.mxu0 0.0
  %800 = vmatprep.subr.mxu0 0.0
  %801 = vmatpush1.msra.mxu0 0.0
  %802 = vmatprep.subr.mxu0 0.0
  %803 = vmatpush1.msra.mxu0 0.0
  %804 = vmatprep.subr.mxu0 0.0
  %805 = vmatpush1.msra.mxu0 0.0
  %806 = vmatprep.subr.mxu0 0.0
  %807 = vmatpush1.msra.mxu0 0.0
  %808 = vmatprep.subr.mxu0 0.0
  %809 = vmatpush1.msra.mxu0 0.0
  %810 = vmatprep.subr.mxu0 0.0
  %811 = vmatpush1.msra.mxu0 0.0
  %812 = vmatprep.subr.mxu0 0.0
  %813 = vmatpush1.msra.mxu0 0.0
  %814 = vmatprep.subr.mxu0 0.0
  %815 = vmatpush1.msra.mxu0 0.0
  %816 = vmatprep.subr.mxu0 0.0
  %817 = vmatpush1.msra.mxu0 0.0
  %818 = vmatprep.subr.mxu0 0.0
  %819 = vmatpush1.msra.mxu0 %v52
  %820 = vmatprep.subr.mxu0 0.0
  %821 = vmatpush1.msra.mxu0 %v51
  %822 = vmatprep.subr.mxu0 0.0
  %823 = vmatpush1.msra.mxu0 %v50
  %824 = vmatprep.subr.mxu0 0.0
  %825 = vmatpush1.msra.mxu0 %v49
  %826 = vmatprep.subr.mxu0 0.0
  %827 = vmatpush2.msra.mxu0 0.0
  %828 = vmatprep.subr.mxu0 0.0
  %829 = vmatpush2.msra.mxu0 0.0
  %830 = vmatprep.subr.mxu0 0.0
  %831 = vmatpush2.msra.mxu0 0.0
  %832 = vmatprep.subr.mxu0 0.0
  %833 = vmatpush2.msra.mxu0 0.0
  %834 = vmatprep.subr.mxu0 0.0
  %835 = vmatpush2.msra.mxu0 0.0
  %836 = vmatprep.subr.mxu0 0.0
  %837 = vmatpush2.msra.mxu0 0.0
  %838 = vmatprep.subr.mxu0 0.0
  %839 = vmatpush2.msra.mxu0 0.0
  %840 = vmatprep.subr.mxu0 0.0
  %841 = vmatpush2.msra.mxu0 0.0
  %842 = vmatprep.subr.mxu0 0.0
  %843 = vmatpush2.msra.mxu0 0.0
  %844 = vmatprep.subr.mxu0 0.0
  %845 = vmatpush2.msra.mxu0 0.0
  %846 = vmatprep.subr.mxu0 0.0
  %847 = vmatpush2.msra.mxu0 0.0
  %848 = vmatprep.subr.mxu0 0.0
  %849 = vmatpush2.msra.mxu0 0.0
  %850 = vmatprep.subr.mxu0 0.0
  %851 = vmatpush2.msra.mxu0 0.0
  %852 = vmatprep.subr.mxu0 0.0
  %853 = vmatpush2.msra.mxu0 0.0
  %854 = vmatprep.subr.mxu0 0.0
  %855 = vmatpush2.msra.mxu0 0.0
  %856 = vmatprep.subr.mxu0 0.0
  %857 = vmatpush2.msra.mxu0 0.0
  %858 = vmatprep.mubr.f32.mxu0 0.0
  %859 = vmatmul.mubr.f32.gmra.mxu0 %v792
  %v860 = vpop.f32.mrf.mxu0
  %v861 = vadd.f32 0.0, %v860
  %v862 = vpop.f32.mrf.mxu0
  %863 = vdwg.mxu0
  %v864 = vadd.f32 %v182, %v861
  %v865 = vxor.u32 %v864, 2147483648
  %v866 = vmul.f32 %v865, 1.442695
  %v867 = vpow.pop %v866
  %v868 = vadd.f32 %v867, 1.0
  %v869 = vrcp.pop %v868
  %v870 = vmul.f32 1.0, %v869
  %v871 = vtanh.pop %v864
  %v872 = vmul.f32 %v870, %v782
  %874 = vrot.lane.b32.xlu0 %v871, 64
  %v875 = vpop.permute.xlu0 %874
  %v877 = vmul.f32 %v870, %v875
  %879 = vrot.lane.b32.xlu0 %v877, 32
  %v880 = vpop.permute.xlu0 %879
  %v882 = vadd.f32 %v872, %v880
  %v883 = vtanh.pop %v882
  %885 = vrot.lane.b32.xlu0 %v883, 64
  %v886 = vpop.permute.xlu0 %885
  %v888 = vmul.f32 %v870, %v886
  %890 = vrot.lane.b32.xlu0 %v888, 32
  %v891 = vpop.permute.xlu0 %890
  %v892 = vsel %vm190, %v891, 0
  %894 = vmatprep.subr.mxu0 0.0
  %895 = vmatpush1.msra.mxu0 0.0
  %896 = vmatprep.subr.mxu0 0.0
  %897 = vmatpush1.msra.mxu0 0.0
  %898 = vmatprep.subr.mxu0 0.0
  %899 = vmatpush1.msra.mxu0 0.0
  %900 = vmatprep.subr.mxu0 0.0
  %901 = vmatpush1.msra.mxu0 0.0
  %902 = vmatprep.subr.mxu0 0.0
  %903 = vmatpush1.msra.mxu0 0.0
  %904 = vmatprep.subr.mxu0 0.0
  %905 = vmatpush1.msra.mxu0 0.0
  %906 = vmatprep.subr.mxu0 0.0
  %907 = vmatpush1.msra.mxu0 0.0
  %908 = vmatprep.subr.mxu0 0.0
  %909 = vmatpush1.msra.mxu0 0.0
  %910 = vmatprep.subr.mxu0 0.0
  %911 = vmatpush1.msra.mxu0 0.0
  %912 = vmatprep.subr.mxu0 0.0
  %913 = vmatpush1.msra.mxu0 0.0
  %914 = vmatprep.subr.mxu0 0.0
  %915 = vmatpush1.msra.mxu0 0.0
  %916 = vmatprep.subr.mxu0 0.0
  %917 = vmatpush1.msra.mxu0 0.0
  %918 = vmatprep.subr.mxu0 0.0
  %919 = vmatpush1.msra.mxu0 %v52
  %920 = vmatprep.subr.mxu0 0.0
  %921 = vmatpush1.msra.mxu0 %v51
  %922 = vmatprep.subr.mxu0 0.0
  %923 = vmatpush1.msra.mxu0 %v50
  %924 = vmatprep.subr.mxu0 0.0
  %925 = vmatpush1.msra.mxu0 %v49
  %926 = vmatprep.subr.mxu0 0.0
  %927 = vmatpush2.msra.mxu0 0.0
  %928 = vmatprep.subr.mxu0 0.0
  %929 = vmatpush2.msra.mxu0 0.0
  %930 = vmatprep.subr.mxu0 0.0
  %931 = vmatpush2.msra.mxu0 0.0
  %932 = vmatprep.subr.mxu0 0.0
  %933 = vmatpush2.msra.mxu0 0.0
  %934 = vmatprep.subr.mxu0 0.0
  %935 = vmatpush2.msra.mxu0 0.0
  %936 = vmatprep.subr.mxu0 0.0
  %937 = vmatpush2.msra.mxu0 0.0
  %938 = vmatprep.subr.mxu0 0.0
  %939 = vmatpush2.msra.mxu0 0.0
  %940 = vmatprep.subr.mxu0 0.0
  %941 = vmatpush2.msra.mxu0 0.0
  %942 = vmatprep.subr.mxu0 0.0
  %943 = vmatpush2.msra.mxu0 0.0
  %944 = vmatprep.subr.mxu0 0.0
  %945 = vmatpush2.msra.mxu0 0.0
  %946 = vmatprep.subr.mxu0 0.0
  %947 = vmatpush2.msra.mxu0 0.0
  %948 = vmatprep.subr.mxu0 0.0
  %949 = vmatpush2.msra.mxu0 0.0
  %950 = vmatprep.subr.mxu0 0.0
  %951 = vmatpush2.msra.mxu0 0.0
  %952 = vmatprep.subr.mxu0 0.0
  %953 = vmatpush2.msra.mxu0 0.0
  %954 = vmatprep.subr.mxu0 0.0
  %955 = vmatpush2.msra.mxu0 0.0
  %956 = vmatprep.subr.mxu0 0.0
  %957 = vmatpush2.msra.mxu0 0.0
  %958 = vmatprep.mubr.f32.mxu0 0.0
  %959 = vmatmul.mubr.f32.gmra.mxu0 %v892
  %v960 = vpop.f32.mrf.mxu0
  %v961 = vadd.f32 0.0, %v960
  %v962 = vpop.f32.mrf.mxu0
  %963 = vdwg.mxu0
  %v964 = vadd.f32 %v187, %v961
  %v965 = vxor.u32 %v964, 2147483648
  %v966 = vmul.f32 %v965, 1.442695
  %v967 = vpow.pop %v966
  %v968 = vadd.f32 %v967, 1.0
  %v969 = vrcp.pop %v968
  %v970 = vmul.f32 1.0, %v969
  %v971 = vtanh.pop %v964
  %v972 = vmul.f32 %v970, %v882
  %974 = vrot.lane.b32.xlu0 %v971, 64
  %v975 = vpop.permute.xlu0 %974
  %v977 = vmul.f32 %v970, %v975
  %979 = vrot.lane.b32.xlu0 %v977, 32
  %v980 = vpop.permute.xlu0 %979
  %v982 = vadd.f32 %v972, %v980
  %v983 = vtanh.pop %v982
  %985 = vrot.lane.b32.xlu0 %v983, 64
  %v986 = vpop.permute.xlu0 %985
  %v988 = vmul.f32 %v970, %v986
  %v989 = vld [vmem:[%s4] sm:$0xff]
  %v990 = vld [vmem:[%s4 + $0x8] sm:$0xff]
  %v991 = vld [vmem:[%s4 + $0x10] sm:$0xff]
  %v992 = vld [vmem:[%s4 + $0x18] sm:$0xff]
  %v993 = vld [vmem:[%s5] sm:$0xff]
  %v994 = vld [vmem:[%s5 + $0x8] sm:$0xff]
  %v995 = vld [vmem:[%s5 + $0x10] sm:$0xff]
  %v996 = vld [vmem:[%s5 + $0x18] sm:$0xff]
  %v997 = vld [vmem:[%s6] sm:$0x1]
  %v999 = vlaneseq
  %v1000 = vshrl.u32 %v999, 7
  %v1001 = vsub.s32 0, %v1000
  %v1002 = vrot.slane %v997, %v1001
  %1005 = vrot.lane.b32.xlu0 %v988, 32
  %v1006 = vpop.permute.xlu0 %1005
  %v1007 = vsel %vm190, %v1006, 0
  %1009 = vmatprep.subr.mxu0 0.0
  %1010 = vmatpush1.msra.mxu0 0.0
  %1011 = vmatprep.subr.mxu0 0.0
  %1012 = vmatpush1.msra.mxu0 0.0
  %1013 = vmatprep.subr.mxu0 0.0
  %1014 = vmatpush1.msra.mxu0 0.0
  %1015 = vmatprep.subr.mxu0 0.0
  %1016 = vmatpush1.msra.mxu0 0.0
  %1017 = vmatprep.subr.mxu0 0.0
  %1018 = vmatpush1.msra.mxu0 0.0
  %1019 = vmatprep.subr.mxu0 0.0
  %1020 = vmatpush1.msra.mxu0 0.0
  %1021 = vmatprep.subr.mxu0 0.0
  %1022 = vmatpush1.msra.mxu0 0.0
  %1023 = vmatprep.subr.mxu0 0.0
  %1024 = vmatpush1.msra.mxu0 0.0
  %1025 = vmatprep.subr.mxu0 0.0
  %1026 = vmatpush1.msra.mxu0 0.0
  %1027 = vmatprep.subr.mxu0 0.0
  %1028 = vmatpush1.msra.mxu0 0.0
  %1029 = vmatprep.subr.mxu0 0.0
  %1030 = vmatpush1.msra.mxu0 0.0
  %1031 = vmatprep.subr.mxu0 0.0
  %1032 = vmatpush1.msra.mxu0 0.0
  %1033 = vmatprep.subr.mxu0 0.0
  %1034 = vmatpush1.msra.mxu0 %v992
  %1035 = vmatprep.subr.mxu0 0.0
  %1036 = vmatpush1.msra.mxu0 %v991
  %1037 = vmatprep.subr.mxu0 0.0
  %1038 = vmatpush1.msra.mxu0 %v990
  %1039 = vmatprep.subr.mxu0 0.0
  %1040 = vmatpush1.msra.mxu0 %v989
  %1041 = vmatprep.subr.mxu0 0.0
  %1042 = vmatpush2.msra.mxu0 0.0
  %1043 = vmatprep.subr.mxu0 0.0
  %1044 = vmatpush2.msra.mxu0 0.0
  %1045 = vmatprep.subr.mxu0 0.0
  %1046 = vmatpush2.msra.mxu0 0.0
  %1047 = vmatprep.subr.mxu0 0.0
  %1048 = vmatpush2.msra.mxu0 0.0
  %1049 = vmatprep.subr.mxu0 0.0
  %1050 = vmatpush2.msra.mxu0 0.0
  %1051 = vmatprep.subr.mxu0 0.0
  %1052 = vmatpush2.msra.mxu0 0.0
  %1053 = vmatprep.subr.mxu0 0.0
  %1054 = vmatpush2.msra.mxu0 0.0
  %1055 = vmatprep.subr.mxu0 0.0
  %1056 = vmatpush2.msra.mxu0 0.0
  %1057 = vmatprep.subr.mxu0 0.0
  %1058 = vmatpush2.msra.mxu0 0.0
  %1059 = vmatprep.subr.mxu0 0.0
  %1060 = vmatpush2.msra.mxu0 0.0
  %1061 = vmatprep.subr.mxu0 0.0
  %1062 = vmatpush2.msra.mxu0 0.0
  %1063 = vmatprep.subr.mxu0 0.0
  %1064 = vmatpush2.msra.mxu0 0.0
  %1065 = vmatprep.subr.mxu0 0.0
  %1066 = vmatpush2.msra.mxu0 0.0
  %1067 = vmatprep.subr.mxu0 0.0
  %1068 = vmatpush2.msra.mxu0 0.0
  %1069 = vmatprep.subr.mxu0 0.0
  %1070 = vmatpush2.msra.mxu0 0.0
  %1071 = vmatprep.subr.mxu0 0.0
  %1072 = vmatpush2.msra.mxu0 0.0
  %1073 = vmatprep.mubr.f32.mxu0 0.0
  %1074 = vmatmul.mubr.f32.gmra.mxu0 %v292
  %v1075 = vpop.f32.mrf.mxu0
  %v1076 = vadd.f32 %v1002, %v1075
  %v1077 = vpop.f32.mrf.mxu0
  %1078 = vmatprep.mubr.f32.mxu0 0.0
  %1079 = vmatmul.mubr.f32.gmra.mxu0 %v392
  %v1080 = vpop.f32.mrf.mxu0
  %v1081 = vadd.f32 %v1002, %v1080
  %v1082 = vpop.f32.mrf.mxu0
  %1083 = vmatprep.mubr.f32.mxu0 0.0
  %1084 = vmatmul.mubr.f32.gmra.mxu0 %v492
  %v1085 = vpop.f32.mrf.mxu0
  %v1086 = vadd.f32 %v1002, %v1085
  %v1087 = vpop.f32.mrf.mxu0
  %1088 = vmatprep.mubr.f32.mxu0 0.0
  %1089 = vmatmul.mubr.f32.gmra.mxu0 %v592
  %v1090 = vpop.f32.mrf.mxu0
  %v1091 = vadd.f32 %v1002, %v1090
  %v1092 = vpop.f32.mrf.mxu0
  %1093 = vmatprep.mubr.f32.mxu0 0.0
  %1094 = vmatmul.mubr.f32.gmra.mxu0 %v692
  %v1095 = vpop.f32.mrf.mxu0
  %v1096 = vadd.f32 %v1002, %v1095
  %v1097 = vpop.f32.mrf.mxu0
  %1098 = vmatprep.mubr.f32.mxu0 0.0
  %1099 = vmatmul.mubr.f32.gmra.mxu0 %v792
  %v1100 = vpop.f32.mrf.mxu0
  %v1101 = vadd.f32 %v1002, %v1100
  %v1102 = vpop.f32.mrf.mxu0
  %1103 = vmatprep.mubr.f32.mxu0 0.0
  %1104 = vmatmul.mubr.f32.gmra.mxu0 %v892
  %v1105 = vpop.f32.mrf.mxu0
  %v1106 = vadd.f32 %v1002, %v1105
  %v1107 = vpop.f32.mrf.mxu0
  %1108 = vmatprep.mubr.f32.mxu0 0.0
  %1109 = vmatmul.mubr.f32.gmra.mxu0 %v1007
  %v1110 = vpop.f32.mrf.mxu0
  %v1111 = vadd.f32 %v1002, %v1110
  %v1112 = vpop.f32.mrf.mxu0
  %1113 = vdwg.mxu0
  %1114 = vmatprep.subr.mxu0 0.0
  %1115 = vmatpush1.msra.mxu0 0.0
  %1116 = vmatprep.subr.mxu0 0.0
  %1117 = vmatpush1.msra.mxu0 0.0
  %1118 = vmatprep.subr.mxu0 0.0
  %1119 = vmatpush1.msra.mxu0 0.0
  %1120 = vmatprep.subr.mxu0 0.0
  %1121 = vmatpush1.msra.mxu0 0.0
  %1122 = vmatprep.subr.mxu0 0.0
  %1123 = vmatpush1.msra.mxu0 0.0
  %1124 = vmatprep.subr.mxu0 0.0
  %1125 = vmatpush1.msra.mxu0 0.0
  %1126 = vmatprep.subr.mxu0 0.0
  %1127 = vmatpush1.msra.mxu0 0.0
  %1128 = vmatprep.subr.mxu0 0.0
  %1129 = vmatpush1.msra.mxu0 0.0
  %1130 = vmatprep.subr.mxu0 0.0
  %1131 = vmatpush1.msra.mxu0 0.0
  %1132 = vmatprep.subr.mxu0 0.0
  %1133 = vmatpush1.msra.mxu0 0.0
  %1134 = vmatprep.subr.mxu0 0.0
  %1135 = vmatpush1.msra.mxu0 0.0
  %1136 = vmatprep.subr.mxu0 0.0
  %1137 = vmatpush1.msra.mxu0 0.0
  %1138 = vmatprep.subr.mxu0 0.0
  %1139 = vmatpush1.msra.mxu0 %v996
  %1140 = vmatprep.subr.mxu0 0.0
  %1141 = vmatpush1.msra.mxu0 %v995
  %1142 = vmatprep.subr.mxu0 0.0
  %1143 = vmatpush1.msra.mxu0 %v994
  %1144 = vmatprep.subr.mxu0 0.0
  %1145 = vmatpush1.msra.mxu0 %v993
  %1146 = vmatprep.subr.mxu0 0.0
  %1147 = vmatpush2.msra.mxu0 0.0
  %1148 = vmatprep.subr.mxu0 0.0
  %1149 = vmatpush2.msra.mxu0 0.0
  %1150 = vmatprep.subr.mxu0 0.0
  %1151 = vmatpush2.msra.mxu0 0.0
  %1152 = vmatprep.subr.mxu0 0.0
  %1153 = vmatpush2.msra.mxu0 0.0
  %1154 = vmatprep.subr.mxu0 0.0
  %1155 = vmatpush2.msra.mxu0 0.0
  %1156 = vmatprep.subr.mxu0 0.0
  %1157 = vmatpush2.msra.mxu0 0.0
  %1158 = vmatprep.subr.mxu0 0.0
  %1159 = vmatpush2.msra.mxu0 0.0
  %1160 = vmatprep.subr.mxu0 0.0
  %1161 = vmatpush2.msra.mxu0 0.0
  %1162 = vmatprep.subr.mxu0 0.0
  %1163 = vmatpush2.msra.mxu0 0.0
  %1164 = vmatprep.subr.mxu0 0.0
  %1165 = vmatpush2.msra.mxu0 0.0
  %1166 = vmatprep.subr.mxu0 0.0
  %1167 = vmatpush2.msra.mxu0 0.0
  %1168 = vmatprep.subr.mxu0 0.0
  %1169 = vmatpush2.msra.mxu0 0.0
  %1170 = vmatprep.subr.mxu0 0.0
  %1171 = vmatpush2.msra.mxu0 0.0
  %1172 = vmatprep.subr.mxu0 0.0
  %1173 = vmatpush2.msra.mxu0 0.0
  %1174 = vmatprep.subr.mxu0 0.0
  %1175 = vmatpush2.msra.mxu0 0.0
  %1176 = vmatprep.subr.mxu0 0.0
  %1177 = vmatpush2.msra.mxu0 0.0
  %1178 = vmatprep.mubr.f32.mxu0 0.0
  %1179 = vmatmul.mubr.f32.gmra.mxu0 %v192
  %v1180 = vpop.f32.mrf.mxu0
  %v1181 = vadd.f32 0.0, %v1180
  %v1182 = vpop.f32.mrf.mxu0
  %1183 = vdwg.mxu0
  %v1184 = vadd.f32 %v1076, %v1181
  %v1185 = vxor.u32 %v1184, 2147483648
  %v1186 = vmul.f32 %v1185, 1.442695
  %v1187 = vpow.pop %v1186
  %v1188 = vadd.f32 %v1187, 1.0
  %v1189 = vrcp.pop %v1188
  %v1190 = vmul.f32 1.0, %v1189
  %v1191 = vtanh.pop %v1184
  %v1192 = vmul.f32 %v1190, 0.0
  %1194 = vrot.lane.b32.xlu0 %v1191, 64
  %v1195 = vpop.permute.xlu0 %1194
  %v1197 = vmul.f32 %v1190, %v1195
  %1199 = vrot.lane.b32.xlu0 %v1197, 32
  %v1200 = vpop.permute.xlu0 %1199
  %v1202 = vadd.f32 %v1192, %v1200
  %v1203 = vtanh.pop %v1202
  %1205 = vrot.lane.b32.xlu0 %v1203, 64
  %v1206 = vpop.permute.xlu0 %1205
  %v1208 = vmul.f32 %v1190, %v1206
  %1210 = vrot.lane.b32.xlu0 %v1208, 32
  %v1211 = vpop.permute.xlu0 %1210
  %v1212 = vsel %vm190, %v1211, 0
  %1214 = vmatprep.subr.mxu0 0.0
  %1215 = vmatpush1.msra.mxu0 0.0
  %1216 = vmatprep.subr.mxu0 0.0
  %1217 = vmatpush1.msra.mxu0 0.0
  %1218 = vmatprep.subr.mxu0 0.0
  %1219 = vmatpush1.msra.mxu0 0.0
  %1220 = vmatprep.subr.mxu0 0.0
  %1221 = vmatpush1.msra.mxu0 0.0
  %1222 = vmatprep.subr.mxu0 0.0
  %1223 = vmatpush1.msra.mxu0 0.0
  %1224 = vmatprep.subr.mxu0 0.0
  %1225 = vmatpush1.msra.mxu0 0.0
  %1226 = vmatprep.subr.mxu0 0.0
  %1227 = vmatpush1.msra.mxu0 0.0
  %1228 = vmatprep.subr.mxu0 0.0
  %1229 = vmatpush1.msra.mxu0 0.0
  %1230 = vmatprep.subr.mxu0 0.0
  %1231 = vmatpush1.msra.mxu0 0.0
  %1232 = vmatprep.subr.mxu0 0.0
  %1233 = vmatpush1.msra.mxu0 0.0
  %1234 = vmatprep.subr.mxu0 0.0
  %1235 = vmatpush1.msra.mxu0 0.0
  %1236 = vmatprep.subr.mxu0 0.0
  %1237 = vmatpush1.msra.mxu0 0.0
  %1238 = vmatprep.subr.mxu0 0.0
  %1239 = vmatpush1.msra.mxu0 %v996
  %1240 = vmatprep.subr.mxu0 0.0
  %1241 = vmatpush1.msra.mxu0 %v995
  %1242 = vmatprep.subr.mxu0 0.0
  %1243 = vmatpush1.msra.mxu0 %v994
  %1244 = vmatprep.subr.mxu0 0.0
  %1245 = vmatpush1.msra.mxu0 %v993
  %1246 = vmatprep.subr.mxu0 0.0
  %1247 = vmatpush2.msra.mxu0 0.0
  %1248 = vmatprep.subr.mxu0 0.0
  %1249 = vmatpush2.msra.mxu0 0.0
  %1250 = vmatprep.subr.mxu0 0.0
  %1251 = vmatpush2.msra.mxu0 0.0
  %1252 = vmatprep.subr.mxu0 0.0
  %1253 = vmatpush2.msra.mxu0 0.0
  %1254 = vmatprep.subr.mxu0 0.0
  %1255 = vmatpush2.msra.mxu0 0.0
  %1256 = vmatprep.subr.mxu0 0.0
  %1257 = vmatpush2.msra.mxu0 0.0
  %1258 = vmatprep.subr.mxu0 0.0
  %1259 = vmatpush2.msra.mxu0 0.0
  %1260 = vmatprep.subr.mxu0 0.0
  %1261 = vmatpush2.msra.mxu0 0.0
  %1262 = vmatprep.subr.mxu0 0.0
  %1263 = vmatpush2.msra.mxu0 0.0
  %1264 = vmatprep.subr.mxu0 0.0
  %1265 = vmatpush2.msra.mxu0 0.0
  %1266 = vmatprep.subr.mxu0 0.0
  %1267 = vmatpush2.msra.mxu0 0.0
  %1268 = vmatprep.subr.mxu0 0.0
  %1269 = vmatpush2.msra.mxu0 0.0
  %1270 = vmatprep.subr.mxu0 0.0
  %1271 = vmatpush2.msra.mxu0 0.0
  %1272 = vmatprep.subr.mxu0 0.0
  %1273 = vmatpush2.msra.mxu0 0.0
  %1274 = vmatprep.subr.mxu0 0.0
  %1275 = vmatpush2.msra.mxu0 0.0
  %1276 = vmatprep.subr.mxu0 0.0
  %1277 = vmatpush2.msra.mxu0 0.0
  %1278 = vmatprep.mubr.f32.mxu0 0.0
  %1279 = vmatmul.mubr.f32.gmra.mxu0 %v1212
  %v1280 = vpop.f32.mrf.mxu0
  %v1281 = vadd.f32 0.0, %v1280
  %v1282 = vpop.f32.mrf.mxu0
  %1283 = vdwg.mxu0
  %v1284 = vadd.f32 %v1081, %v1281
  %v1285 = vxor.u32 %v1284, 2147483648
  %v1286 = vmul.f32 %v1285, 1.442695
  %v1287 = vpow.pop %v1286
  %v1288 = vadd.f32 %v1287, 1.0
  %v1289 = vrcp.pop %v1288
  %v1290 = vmul.f32 1.0, %v1289
  %v1291 = vtanh.pop %v1284
  %v1292 = vmul.f32 %v1290, %v1202
  %1294 = vrot.lane.b32.xlu0 %v1291, 64
  %v1295 = vpop.permute.xlu0 %1294
  %v1297 = vmul.f32 %v1290, %v1295
  %1299 = vrot.lane.b32.xlu0 %v1297, 32
  %v1300 = vpop.permute.xlu0 %1299
  %v1302 = vadd.f32 %v1292, %v1300
  %v1303 = vtanh.pop %v1302
  %1305 = vrot.lane.b32.xlu0 %v1303, 64
  %v1306 = vpop.permute.xlu0 %1305
  %v1308 = vmul.f32 %v1290, %v1306
  %1310 = vrot.lane.b32.xlu0 %v1308, 32
  %v1311 = vpop.permute.xlu0 %1310
  %v1312 = vsel %vm190, %v1311, 0
  %1314 = vmatprep.subr.mxu0 0.0
  %1315 = vmatpush1.msra.mxu0 0.0
  %1316 = vmatprep.subr.mxu0 0.0
  %1317 = vmatpush1.msra.mxu0 0.0
  %1318 = vmatprep.subr.mxu0 0.0
  %1319 = vmatpush1.msra.mxu0 0.0
  %1320 = vmatprep.subr.mxu0 0.0
  %1321 = vmatpush1.msra.mxu0 0.0
  %1322 = vmatprep.subr.mxu0 0.0
  %1323 = vmatpush1.msra.mxu0 0.0
  %1324 = vmatprep.subr.mxu0 0.0
  %1325 = vmatpush1.msra.mxu0 0.0
  %1326 = vmatprep.subr.mxu0 0.0
  %1327 = vmatpush1.msra.mxu0 0.0
  %1328 = vmatprep.subr.mxu0 0.0
  %1329 = vmatpush1.msra.mxu0 0.0
  %1330 = vmatprep.subr.mxu0 0.0
  %1331 = vmatpush1.msra.mxu0 0.0
  %1332 = vmatprep.subr.mxu0 0.0
  %1333 = vmatpush1.msra.mxu0 0.0
  %1334 = vmatprep.subr.mxu0 0.0
  %1335 = vmatpush1.msra.mxu0 0.0
  %1336 = vmatprep.subr.mxu0 0.0
  %1337 = vmatpush1.msra.mxu0 0.0
  %1338 = vmatprep.subr.mxu0 0.0
  %1339 = vmatpush1.msra.mxu0 %v996
  %1340 = vmatprep.subr.mxu0 0.0
  %1341 = vmatpush1.msra.mxu0 %v995
  %1342 = vmatprep.subr.mxu0 0.0
  %1343 = vmatpush1.msra.mxu0 %v994
  %1344 = vmatprep.subr.mxu0 0.0
  %1345 = vmatpush1.msra.mxu0 %v993
  %1346 = vmatprep.subr.mxu0 0.0
  %1347 = vmatpush2.msra.mxu0 0.0
  %1348 = vmatprep.subr.mxu0 0.0
  %1349 = vmatpush2.msra.mxu0 0.0
  %1350 = vmatprep.subr.mxu0 0.0
  %1351 = vmatpush2.msra.mxu0 0.0
  %1352 = vmatprep.subr.mxu0 0.0
  %1353 = vmatpush2.msra.mxu0 0.0
  %1354 = vmatprep.subr.mxu0 0.0
  %1355 = vmatpush2.msra.mxu0 0.0
  %1356 = vmatprep.subr.mxu0 0.0
  %1357 = vmatpush2.msra.mxu0 0.0
  %1358 = vmatprep.subr.mxu0 0.0
  %1359 = vmatpush2.msra.mxu0 0.0
  %1360 = vmatprep.subr.mxu0 0.0
  %1361 = vmatpush2.msra.mxu0 0.0
  %1362 = vmatprep.subr.mxu0 0.0
  %1363 = vmatpush2.msra.mxu0 0.0
  %1364 = vmatprep.subr.mxu0 0.0
  %1365 = vmatpush2.msra.mxu0 0.0
  %1366 = vmatprep.subr.mxu0 0.0
  %1367 = vmatpush2.msra.mxu0 0.0
  %1368 = vmatprep.subr.mxu0 0.0
  %1369 = vmatpush2.msra.mxu0 0.0
  %1370 = vmatprep.subr.mxu0 0.0
  %1371 = vmatpush2.msra.mxu0 0.0
  %1372 = vmatprep.subr.mxu0 0.0
  %1373 = vmatpush2.msra.mxu0 0.0
  %1374 = vmatprep.subr.mxu0 0.0
  %1375 = vmatpush2.msra.mxu0 0.0
  %1376 = vmatprep.subr.mxu0 0.0
  %1377 = vmatpush2.msra.mxu0 0.0
  %1378 = vmatprep.mubr.f32.mxu0 0.0
  %1379 = vmatmul.mubr.f32.gmra.mxu0 %v1312
  %v1380 = vpop.f32.mrf.mxu0
  %v1381 = vadd.f32 0.0, %v1380
  %v1382 = vpop.f32.mrf.mxu0
  %1383 = vdwg.mxu0
  %v1384 = vadd.f32 %v1086, %v1381
  %v1385 = vxor.u32 %v1384, 2147483648
  %v1386 = vmul.f32 %v1385, 1.442695
  %v1387 = vpow.pop %v1386
  %v1388 = vadd.f32 %v1387, 1.0
  %v1389 = vrcp.pop %v1388
  %v1390 = vmul.f32 1.0, %v1389
  %v1391 = vtanh.pop %v1384
  %v1392 = vmul.f32 %v1390, %v1302
  %1394 = vrot.lane.b32.xlu0 %v1391, 64
  %v1395 = vpop.permute.xlu0 %1394
  %v1397 = vmul.f32 %v1390, %v1395
  %1399 = vrot.lane.b32.xlu0 %v1397, 32
  %v1400 = vpop.permute.xlu0 %1399
  %v1402 = vadd.f32 %v1392, %v1400
  %v1403 = vtanh.pop %v1402
  %1405 = vrot.lane.b32.xlu0 %v1403, 64
  %v1406 = vpop.permute.xlu0 %1405
  %v1408 = vmul.f32 %v1390, %v1406
  %1410 = vrot.lane.b32.xlu0 %v1408, 32
  %v1411 = vpop.permute.xlu0 %1410
  %v1412 = vsel %vm190, %v1411, 0
  %1414 = vmatprep.subr.mxu0 0.0
  %1415 = vmatpush1.msra.mxu0 0.0
  %1416 = vmatprep.subr.mxu0 0.0
  %1417 = vmatpush1.msra.mxu0 0.0
  %1418 = vmatprep.subr.mxu0 0.0
  %1419 = vmatpush1.msra.mxu0 0.0
  %1420 = vmatprep.subr.mxu0 0.0
  %1421 = vmatpush1.msra.mxu0 0.0
  %1422 = vmatprep.subr.mxu0 0.0
  %1423 = vmatpush1.msra.mxu0 0.0
  %1424 = vmatprep.subr.mxu0 0.0
  %1425 = vmatpush1.msra.mxu0 0.0
  %1426 = vmatprep.subr.mxu0 0.0
  %1427 = vmatpush1.msra.mxu0 0.0
  %1428 = vmatprep.subr.mxu0 0.0
  %1429 = vmatpush1.msra.mxu0 0.0
  %1430 = vmatprep.subr.mxu0 0.0
  %1431 = vmatpush1.msra.mxu0 0.0
  %1432 = vmatprep.subr.mxu0 0.0
  %1433 = vmatpush1.msra.mxu0 0.0
  %1434 = vmatprep.subr.mxu0 0.0
  %1435 = vmatpush1.msra.mxu0 0.0
  %1436 = vmatprep.subr.mxu0 0.0
  %1437 = vmatpush1.msra.mxu0 0.0
  %1438 = vmatprep.subr.mxu0 0.0
  %1439 = vmatpush1.msra.mxu0 %v996
  %1440 = vmatprep.subr.mxu0 0.0
  %1441 = vmatpush1.msra.mxu0 %v995
  %1442 = vmatprep.subr.mxu0 0.0
  %1443 = vmatpush1.msra.mxu0 %v994
  %1444 = vmatprep.subr.mxu0 0.0
  %1445 = vmatpush1.msra.mxu0 %v993
  %1446 = vmatprep.subr.mxu0 0.0
  %1447 = vmatpush2.msra.mxu0 0.0
  %1448 = vmatprep.subr.mxu0 0.0
  %1449 = vmatpush2.msra.mxu0 0.0
  %1450 = vmatprep.subr.mxu0 0.0
  %1451 = vmatpush2.msra.mxu0 0.0
  %1452 = vmatprep.subr.mxu0 0.0
  %1453 = vmatpush2.msra.mxu0 0.0
  %1454 = vmatprep.subr.mxu0 0.0
  %1455 = vmatpush2.msra.mxu0 0.0
  %1456 = vmatprep.subr.mxu0 0.0
  %1457 = vmatpush2.msra.mxu0 0.0
  %1458 = vmatprep.subr.mxu0 0.0
  %1459 = vmatpush2.msra.mxu0 0.0
  %1460 = vmatprep.subr.mxu0 0.0
  %1461 = vmatpush2.msra.mxu0 0.0
  %1462 = vmatprep.subr.mxu0 0.0
  %1463 = vmatpush2.msra.mxu0 0.0
  %1464 = vmatprep.subr.mxu0 0.0
  %1465 = vmatpush2.msra.mxu0 0.0
  %1466 = vmatprep.subr.mxu0 0.0
  %1467 = vmatpush2.msra.mxu0 0.0
  %1468 = vmatprep.subr.mxu0 0.0
  %1469 = vmatpush2.msra.mxu0 0.0
  %1470 = vmatprep.subr.mxu0 0.0
  %1471 = vmatpush2.msra.mxu0 0.0
  %1472 = vmatprep.subr.mxu0 0.0
  %1473 = vmatpush2.msra.mxu0 0.0
  %1474 = vmatprep.subr.mxu0 0.0
  %1475 = vmatpush2.msra.mxu0 0.0
  %1476 = vmatprep.subr.mxu0 0.0
  %1477 = vmatpush2.msra.mxu0 0.0
  %1478 = vmatprep.mubr.f32.mxu0 0.0
  %1479 = vmatmul.mubr.f32.gmra.mxu0 %v1412
  %v1480 = vpop.f32.mrf.mxu0
  %v1481 = vadd.f32 0.0, %v1480
  %v1482 = vpop.f32.mrf.mxu0
  %1483 = vdwg.mxu0
  %v1484 = vadd.f32 %v1091, %v1481
  %v1485 = vxor.u32 %v1484, 2147483648
  %v1486 = vmul.f32 %v1485, 1.442695
  %v1487 = vpow.pop %v1486
  %v1488 = vadd.f32 %v1487, 1.0
  %v1489 = vrcp.pop %v1488
  %v1490 = vmul.f32 1.0, %v1489
  %v1491 = vtanh.pop %v1484
  %v1492 = vmul.f32 %v1490, %v1402
  %1494 = vrot.lane.b32.xlu0 %v1491, 64
  %v1495 = vpop.permute.xlu0 %1494
  %v1497 = vmul.f32 %v1490, %v1495
  %1499 = vrot.lane.b32.xlu0 %v1497, 32
  %v1500 = vpop.permute.xlu0 %1499
  %v1502 = vadd.f32 %v1492, %v1500
  %v1503 = vtanh.pop %v1502
  %1505 = vrot.lane.b32.xlu0 %v1503, 64
  %v1506 = vpop.permute.xlu0 %1505
  %v1508 = vmul.f32 %v1490, %v1506
  %1510 = vrot.lane.b32.xlu0 %v1508, 32
  %v1511 = vpop.permute.xlu0 %1510
  %v1512 = vsel %vm190, %v1511, 0
  %1514 = vmatprep.subr.mxu0 0.0
  %1515 = vmatpush1.msra.mxu0 0.0
  %1516 = vmatprep.subr.mxu0 0.0
  %1517 = vmatpush1.msra.mxu0 0.0
  %1518 = vmatprep.subr.mxu0 0.0
  %1519 = vmatpush1.msra.mxu0 0.0
  %1520 = vmatprep.subr.mxu0 0.0
  %1521 = vmatpush1.msra.mxu0 0.0
  %1522 = vmatprep.subr.mxu0 0.0
  %1523 = vmatpush1.msra.mxu0 0.0
  %1524 = vmatprep.subr.mxu0 0.0
  %1525 = vmatpush1.msra.mxu0 0.0
  %1526 = vmatprep.subr.mxu0 0.0
  %1527 = vmatpush1.msra.mxu0 0.0
  %1528 = vmatprep.subr.mxu0 0.0
  %1529 = vmatpush1.msra.mxu0 0.0
  %1530 = vmatprep.subr.mxu0 0.0
  %1531 = vmatpush1.msra.mxu0 0.0
  %1532 = vmatprep.subr.mxu0 0.0
  %1533 = vmatpush1.msra.mxu0 0.0
  %1534 = vmatprep.subr.mxu0 0.0
  %1535 = vmatpush1.msra.mxu0 0.0
  %1536 = vmatprep.subr.mxu0 0.0
  %1537 = vmatpush1.msra.mxu0 0.0
  %1538 = vmatprep.subr.mxu0 0.0
  %1539 = vmatpush1.msra.mxu0 %v996
  %1540 = vmatprep.subr.mxu0 0.0
  %1541 = vmatpush1.msra.mxu0 %v995
  %1542 = vmatprep.subr.mxu0 0.0
  %1543 = vmatpush1.msra.mxu0 %v994
  %1544 = vmatprep.subr.mxu0 0.0
  %1545 = vmatpush1.msra.mxu0 %v993
  %1546 = vmatprep.subr.mxu0 0.0
  %1547 = vmatpush2.msra.mxu0 0.0
  %1548 = vmatprep.subr.mxu0 0.0
  %1549 = vmatpush2.msra.mxu0 0.0
  %1550 = vmatprep.subr.mxu0 0.0
  %1551 = vmatpush2.msra.mxu0 0.0
  %1552 = vmatprep.subr.mxu0 0.0
  %1553 = vmatpush2.msra.mxu0 0.0
  %1554 = vmatprep.subr.mxu0 0.0
  %1555 = vmatpush2.msra.mxu0 0.0
  %1556 = vmatprep.subr.mxu0 0.0
  %1557 = vmatpush2.msra.mxu0 0.0
  %1558 = vmatprep.subr.mxu0 0.0
  %1559 = vmatpush2.msra.mxu0 0.0
  %1560 = vmatprep.subr.mxu0 0.0
  %1561 = vmatpush2.msra.mxu0 0.0
  %1562 = vmatprep.subr.mxu0 0.0
  %1563 = vmatpush2.msra.mxu0 0.0
  %1564 = vmatprep.subr.mxu0 0.0
  %1565 = vmatpush2.msra.mxu0 0.0
  %1566 = vmatprep.subr.mxu0 0.0
  %1567 = vmatpush2.msra.mxu0 0.0
  %1568 = vmatprep.subr.mxu0 0.0
  %1569 = vmatpush2.msra.mxu0 0.0
  %1570 = vmatprep.subr.mxu0 0.0
  %1571 = vmatpush2.msra.mxu0 0.0
  %1572 = vmatprep.subr.mxu0 0.0
  %1573 = vmatpush2.msra.mxu0 0.0
  %1574 = vmatprep.subr.mxu0 0.0
  %1575 = vmatpush2.msra.mxu0 0.0
  %1576 = vmatprep.subr.mxu0 0.0
  %1577 = vmatpush2.msra.mxu0 0.0
  %1578 = vmatprep.mubr.f32.mxu0 0.0
  %1579 = vmatmul.mubr.f32.gmra.mxu0 %v1512
  %v1580 = vpop.f32.mrf.mxu0
  %v1581 = vadd.f32 0.0, %v1580
  %v1582 = vpop.f32.mrf.mxu0
  %1583 = vdwg.mxu0
  %v1584 = vadd.f32 %v1096, %v1581
  %v1585 = vxor.u32 %v1584, 2147483648
  %v1586 = vmul.f32 %v1585, 1.442695
  %v1587 = vpow.pop %v1586
  %v1588 = vadd.f32 %v1587, 1.0
  %v1589 = vrcp.pop %v1588
  %v1590 = vmul.f32 1.0, %v1589
  %v1591 = vtanh.pop %v1584
  %v1592 = vmul.f32 %v1590, %v1502
  %1594 = vrot.lane.b32.xlu0 %v1591, 64
  %v1595 = vpop.permute.xlu0 %1594
  %v1597 = vmul.f32 %v1590, %v1595
  %1599 = vrot.lane.b32.xlu0 %v1597, 32
  %v1600 = vpop.permute.xlu0 %1599
  %v1602 = vadd.f32 %v1592, %v1600
  %v1603 = vtanh.pop %v1602
  %1605 = vrot.lane.b32.xlu0 %v1603, 64
  %v1606 = vpop.permute.xlu0 %1605
  %v1608 = vmul.f32 %v1590, %v1606
  %1610 = vrot.lane.b32.xlu0 %v1608, 32
  %v1611 = vpop.permute.xlu0 %1610
  %v1612 = vsel %vm190, %v1611, 0
  %1614 = vmatprep.subr.mxu0 0.0
  %1615 = vmatpush1.msra.mxu0 0.0
  %1616 = vmatprep.subr.mxu0 0.0
  %1617 = vmatpush1.msra.mxu0 0.0
  %1618 = vmatprep.subr.mxu0 0.0
  %1619 = vmatpush1.msra.mxu0 0.0
  %1620 = vmatprep.subr.mxu0 0.0
  %1621 = vmatpush1.msra.mxu0 0.0
  %1622 = vmatprep.subr.mxu0 0.0
  %1623 = vmatpush1.msra.mxu0 0.0
  %1624 = vmatprep.subr.mxu0 0.0
  %1625 = vmatpush1.msra.mxu0 0.0
  %1626 = vmatprep.subr.mxu0 0.0
  %1627 = vmatpush1.msra.mxu0 0.0
  %1628 = vmatprep.subr.mxu0 0.0
  %1629 = vmatpush1.msra.mxu0 0.0
  %1630 = vmatprep.subr.mxu0 0.0
  %1631 = vmatpush1.msra.mxu0 0.0
  %1632 = vmatprep.subr.mxu0 0.0
  %1633 = vmatpush1.msra.mxu0 0.0
  %1634 = vmatprep.subr.mxu0 0.0
  %1635 = vmatpush1.msra.mxu0 0.0
  %1636 = vmatprep.subr.mxu0 0.0
  %1637 = vmatpush1.msra.mxu0 0.0
  %1638 = vmatprep.subr.mxu0 0.0
  %1639 = vmatpush1.msra.mxu0 %v996
  %1640 = vmatprep.subr.mxu0 0.0
  %1641 = vmatpush1.msra.mxu0 %v995
  %1642 = vmatprep.subr.mxu0 0.0
  %1643 = vmatpush1.msra.mxu0 %v994
  %1644 = vmatprep.subr.mxu0 0.0
  %1645 = vmatpush1.msra.mxu0 %v993
  %1646 = vmatprep.subr.mxu0 0.0
  %1647 = vmatpush2.msra.mxu0 0.0
  %1648 = vmatprep.subr.mxu0 0.0
  %1649 = vmatpush2.msra.mxu0 0.0
  %1650 = vmatprep.subr.mxu0 0.0
  %1651 = vmatpush2.msra.mxu0 0.0
  %1652 = vmatprep.subr.mxu0 0.0
  %1653 = vmatpush2.msra.mxu0 0.0
  %1654 = vmatprep.subr.mxu0 0.0
  %1655 = vmatpush2.msra.mxu0 0.0
  %1656 = vmatprep.subr.mxu0 0.0
  %1657 = vmatpush2.msra.mxu0 0.0
  %1658 = vmatprep.subr.mxu0 0.0
  %1659 = vmatpush2.msra.mxu0 0.0
  %1660 = vmatprep.subr.mxu0 0.0
  %1661 = vmatpush2.msra.mxu0 0.0
  %1662 = vmatprep.subr.mxu0 0.0
  %1663 = vmatpush2.msra.mxu0 0.0
  %1664 = vmatprep.subr.mxu0 0.0
  %1665 = vmatpush2.msra.mxu0 0.0
  %1666 = vmatprep.subr.mxu0 0.0
  %1667 = vmatpush2.msra.mxu0 0.0
  %1668 = vmatprep.subr.mxu0 0.0
  %1669 = vmatpush2.msra.mxu0 0.0
  %1670 = vmatprep.subr.mxu0 0.0
  %1671 = vmatpush2.msra.mxu0 0.0
  %1672 = vmatprep.subr.mxu0 0.0
  %1673 = vmatpush2.msra.mxu0 0.0
  %1674 = vmatprep.subr.mxu0 0.0
  %1675 = vmatpush2.msra.mxu0 0.0
  %1676 = vmatprep.subr.mxu0 0.0
  %1677 = vmatpush2.msra.mxu0 0.0
  %1678 = vmatprep.mubr.f32.mxu0 0.0
  %1679 = vmatmul.mubr.f32.gmra.mxu0 %v1612
  %v1680 = vpop.f32.mrf.mxu0
  %v1681 = vadd.f32 0.0, %v1680
  %v1682 = vpop.f32.mrf.mxu0
  %1683 = vdwg.mxu0
  %v1684 = vadd.f32 %v1101, %v1681
  %v1685 = vxor.u32 %v1684, 2147483648
  %v1686 = vmul.f32 %v1685, 1.442695
  %v1687 = vpow.pop %v1686
  %v1688 = vadd.f32 %v1687, 1.0
  %v1689 = vrcp.pop %v1688
  %v1690 = vmul.f32 1.0, %v1689
  %v1691 = vtanh.pop %v1684
  %v1692 = vmul.f32 %v1690, %v1602
  %1694 = vrot.lane.b32.xlu0 %v1691, 64
  %v1695 = vpop.permute.xlu0 %1694
  %v1697 = vmul.f32 %v1690, %v1695
  %1699 = vrot.lane.b32.xlu0 %v1697, 32
  %v1700 = vpop.permute.xlu0 %1699
  %v1702 = vadd.f32 %v1692, %v1700
  %v1703 = vtanh.pop %v1702
  %1705 = vrot.lane.b32.xlu0 %v1703, 64
  %v1706 = vpop.permute.xlu0 %1705
  %v1708 = vmul.f32 %v1690, %v1706
  %1710 = vrot.lane.b32.xlu0 %v1708, 32
  %v1711 = vpop.permute.xlu0 %1710
  %v1712 = vsel %vm190, %v1711, 0
  %1714 = vmatprep.subr.mxu0 0.0
  %1715 = vmatpush1.msra.mxu0 0.0
  %1716 = vmatprep.subr.mxu0 0.0
  %1717 = vmatpush1.msra.mxu0 0.0
  %1718 = vmatprep.subr.mxu0 0.0
  %1719 = vmatpush1.msra.mxu0 0.0
  %1720 = vmatprep.subr.mxu0 0.0
  %1721 = vmatpush1.msra.mxu0 0.0
  %1722 = vmatprep.subr.mxu0 0.0
  %1723 = vmatpush1.msra.mxu0 0.0
  %1724 = vmatprep.subr.mxu0 0.0
  %1725 = vmatpush1.msra.mxu0 0.0
  %1726 = vmatprep.subr.mxu0 0.0
  %1727 = vmatpush1.msra.mxu0 0.0
  %1728 = vmatprep.subr.mxu0 0.0
  %1729 = vmatpush1.msra.mxu0 0.0
  %1730 = vmatprep.subr.mxu0 0.0
  %1731 = vmatpush1.msra.mxu0 0.0
  %1732 = vmatprep.subr.mxu0 0.0
  %1733 = vmatpush1.msra.mxu0 0.0
  %1734 = vmatprep.subr.mxu0 0.0
  %1735 = vmatpush1.msra.mxu0 0.0
  %1736 = vmatprep.subr.mxu0 0.0
  %1737 = vmatpush1.msra.mxu0 0.0
  %1738 = vmatprep.subr.mxu0 0.0
  %1739 = vmatpush1.msra.mxu0 %v996
  %1740 = vmatprep.subr.mxu0 0.0
  %1741 = vmatpush1.msra.mxu0 %v995
  %1742 = vmatprep.subr.mxu0 0.0
  %1743 = vmatpush1.msra.mxu0 %v994
  %1744 = vmatprep.subr.mxu0 0.0
  %1745 = vmatpush1.msra.mxu0 %v993
  %1746 = vmatprep.subr.mxu0 0.0
  %1747 = vmatpush2.msra.mxu0 0.0
  %1748 = vmatprep.subr.mxu0 0.0
  %1749 = vmatpush2.msra.mxu0 0.0
  %1750 = vmatprep.subr.mxu0 0.0
  %1751 = vmatpush2.msra.mxu0 0.0
  %1752 = vmatprep.subr.mxu0 0.0
  %1753 = vmatpush2.msra.mxu0 0.0
  %1754 = vmatprep.subr.mxu0 0.0
  %1755 = vmatpush2.msra.mxu0 0.0
  %1756 = vmatprep.subr.mxu0 0.0
  %1757 = vmatpush2.msra.mxu0 0.0
  %1758 = vmatprep.subr.mxu0 0.0
  %1759 = vmatpush2.msra.mxu0 0.0
  %1760 = vmatprep.subr.mxu0 0.0
  %1761 = vmatpush2.msra.mxu0 0.0
  %1762 = vmatprep.subr.mxu0 0.0
  %1763 = vmatpush2.msra.mxu0 0.0
  %1764 = vmatprep.subr.mxu0 0.0
  %1765 = vmatpush2.msra.mxu0 0.0
  %1766 = vmatprep.subr.mxu0 0.0
  %1767 = vmatpush2.msra.mxu0 0.0
  %1768 = vmatprep.subr.mxu0 0.0
  %1769 = vmatpush2.msra.mxu0 0.0
  %1770 = vmatprep.subr.mxu0 0.0
  %1771 = vmatpush2.msra.mxu0 0.0
  %1772 = vmatprep.subr.mxu0 0.0
  %1773 = vmatpush2.msra.mxu0 0.0
  %1774 = vmatprep.subr.mxu0 0.0
  %1775 = vmatpush2.msra.mxu0 0.0
  %1776 = vmatprep.subr.mxu0 0.0
  %1777 = vmatpush2.msra.mxu0 0.0
  %1778 = vmatprep.mubr.f32.mxu0 0.0
  %1779 = vmatmul.mubr.f32.gmra.mxu0 %v1712
  %v1780 = vpop.f32.mrf.mxu0
  %v1781 = vadd.f32 0.0, %v1780
  %v1782 = vpop.f32.mrf.mxu0
  %1783 = vdwg.mxu0
  %v1784 = vadd.f32 %v1106, %v1781
  %v1785 = vxor.u32 %v1784, 2147483648
  %v1786 = vmul.f32 %v1785, 1.442695
  %v1787 = vpow.pop %v1786
  %v1788 = vadd.f32 %v1787, 1.0
  %v1789 = vrcp.pop %v1788
  %v1790 = vmul.f32 1.0, %v1789
  %v1791 = vtanh.pop %v1784
  %v1792 = vmul.f32 %v1790, %v1702
  %1794 = vrot.lane.b32.xlu0 %v1791, 64
  %v1795 = vpop.permute.xlu0 %1794
  %v1797 = vmul.f32 %v1790, %v1795
  %1799 = vrot.lane.b32.xlu0 %v1797, 32
  %v1800 = vpop.permute.xlu0 %1799
  %v1802 = vadd.f32 %v1792, %v1800
  %v1803 = vtanh.pop %v1802
  %1805 = vrot.lane.b32.xlu0 %v1803, 64
  %v1806 = vpop.permute.xlu0 %1805
  %v1808 = vmul.f32 %v1790, %v1806
  %1810 = vrot.lane.b32.xlu0 %v1808, 32
  %v1811 = vpop.permute.xlu0 %1810
  %v1812 = vsel %vm190, %v1811, 0
  %1814 = vmatprep.subr.mxu0 0.0
  %1815 = vmatpush1.msra.mxu0 0.0
  %1816 = vmatprep.subr.mxu0 0.0
  %1817 = vmatpush1.msra.mxu0 0.0
  %1818 = vmatprep.subr.mxu0 0.0
  %1819 = vmatpush1.msra.mxu0 0.0
  %1820 = vmatprep.subr.mxu0 0.0
  %1821 = vmatpush1.msra.mxu0 0.0
  %1822 = vmatprep.subr.mxu0 0.0
  %1823 = vmatpush1.msra.mxu0 0.0
  %1824 = vmatprep.subr.mxu0 0.0
  %1825 = vmatpush1.msra.mxu0 0.0
  %1826 = vmatprep.subr.mxu0 0.0
  %1827 = vmatpush1.msra.mxu0 0.0
  %1828 = vmatprep.subr.mxu0 0.0
  %1829 = vmatpush1.msra.mxu0 0.0
  %1830 = vmatprep.subr.mxu0 0.0
  %1831 = vmatpush1.msra.mxu0 0.0
  %1832 = vmatprep.subr.mxu0 0.0
  %1833 = vmatpush1.msra.mxu0 0.0
  %1834 = vmatprep.subr.mxu0 0.0
  %1835 = vmatpush1.msra.mxu0 0.0
  %1836 = vmatprep.subr.mxu0 0.0
  %1837 = vmatpush1.msra.mxu0 0.0
  %1838 = vmatprep.subr.mxu0 0.0
  %1839 = vmatpush1.msra.mxu0 %v996
  %1840 = vmatprep.subr.mxu0 0.0
  %1841 = vmatpush1.msra.mxu0 %v995
  %1842 = vmatprep.subr.mxu0 0.0
  %1843 = vmatpush1.msra.mxu0 %v994
  %1844 = vmatprep.subr.mxu0 0.0
  %1845 = vmatpush1.msra.mxu0 %v993
  %1846 = vmatprep.subr.mxu0 0.0
  %1847 = vmatpush2.msra.mxu0 0.0
  %1848 = vmatprep.subr.mxu0 0.0
  %1849 = vmatpush2.msra.mxu0 0.0
  %1850 = vmatprep.subr.mxu0 0.0
  %1851 = vmatpush2.msra.mxu0 0.0
  %1852 = vmatprep.subr.mxu0 0.0
  %1853 = vmatpush2.msra.mxu0 0.0
  %1854 = vmatprep.subr.mxu0 0.0
  %1855 = vmatpush2.msra.mxu0 0.0
  %1856 = vmatprep.subr.mxu0 0.0
  %1857 = vmatpush2.msra.mxu0 0.0
  %1858 = vmatprep.subr.mxu0 0.0
  %1859 = vmatpush2.msra.mxu0 0.0
  %1860 = vmatprep.subr.mxu0 0.0
  %1861 = vmatpush2.msra.mxu0 0.0
  %1862 = vmatprep.subr.mxu0 0.0
  %1863 = vmatpush2.msra.mxu0 0.0
  %1864 = vmatprep.subr.mxu0 0.0
  %1865 = vmatpush2.msra.mxu0 0.0
  %1866 = vmatprep.subr.mxu0 0.0
  %1867 = vmatpush2.msra.mxu0 0.0
  %1868 = vmatprep.subr.mxu0 0.0
  %1869 = vmatpush2.msra.mxu0 0.0
  %1870 = vmatprep.subr.mxu0 0.0
  %1871 = vmatpush2.msra.mxu0 0.0
  %1872 = vmatprep.subr.mxu0 0.0
  %1873 = vmatpush2.msra.mxu0 0.0
  %1874 = vmatprep.subr.mxu0 0.0
  %1875 = vmatpush2.msra.mxu0 0.0
  %1876 = vmatprep.subr.mxu0 0.0
  %1877 = vmatpush2.msra.mxu0 0.0
  %1878 = vmatprep.mubr.f32.mxu0 0.0
  %1879 = vmatmul.mubr.f32.gmra.mxu0 %v1812
  %v1880 = vpop.f32.mrf.mxu0
  %v1881 = vadd.f32 0.0, %v1880
  %v1882 = vpop.f32.mrf.mxu0
  %1883 = vdwg.mxu0
  %v1884 = vadd.f32 %v1111, %v1881
  %v1885 = vxor.u32 %v1884, 2147483648
  %v1886 = vmul.f32 %v1885, 1.442695
  %v1887 = vpow.pop %v1886
  %v1888 = vadd.f32 %v1887, 1.0
  %v1889 = vrcp.pop %v1888
  %v1890 = vmul.f32 1.0, %v1889
  %v1891 = vtanh.pop %v1884
  %v1892 = vmul.f32 %v1890, %v1802
  %1894 = vrot.lane.b32.xlu0 %v1891, 64
  %v1895 = vpop.permute.xlu0 %1894
  %v1897 = vmul.f32 %v1890, %v1895
  %1899 = vrot.lane.b32.xlu0 %v1897, 32
  %v1900 = vpop.permute.xlu0 %1899
  %v1902 = vadd.f32 %v1892, %v1900
  %v1903 = vtanh.pop %v1902
  %1905 = vrot.lane.b32.xlu0 %v1903, 64
  %v1906 = vpop.permute.xlu0 %1905
  %v1908 = vmul.f32 %v1890, %v1906
  %v1909 = vlaneseq
  %v1910 = vshrl.u32 %v1909, 7
  %vm1911 = vcmp.lt.s32.totalorder %v1910, 4
  %v1912 = vsel %vm1911, 1, 0
  %v1913 = vcvt.s32.f32 %v1912
  %v1914 = vmul.f32 %v1908, %v1913
  %vm1915 = vcmask 1048320
  %v1916 = vsel %vm1915, %v1914, 0.0
  %v1917 = vrot.slane %v1916, 4
  %v1918 = vadd.f32 %v1916, %v1917
  %v1919 = vrot.slane %v1918, 2
  %v1920 = vadd.f32 %v1918, %v1919
  %v1921 = vrot.slane %v1920, 1
  %v1922 = vadd.f32 %v1920, %v1921
  %v1923 = vmul.f32 %v1922, 0.25
  %v1924 = vsub.f32 %v1908, %v1923
  %v1925 = vmul.f32 %v1924, %v1913
  %v1926 = vmul.f32 %v1925, %v1925
  %v1927 = vsel %vm1915, %v1926, 0.0
  %v1928 = vrot.slane %v1927, 4
  %v1929 = vadd.f32 %v1927, %v1928
  %v1930 = vrot.slane %v1929, 2
  %v1931 = vadd.f32 %v1929, %v1930
  %v1932 = vrot.slane %v1931, 1
  %v1933 = vadd.f32 %v1931, %v1932
  %v1934 = vmul.f32 %v1933, 0.25
  %v1935 = vadd.f32 %v1934, 1e-05
  %v1936 = vrsqrt.pop %v1935
  %v1937 = vmul.f32 %v1924, %v1936
  %v1938 = vld [vmem:[%s7] sm:$0x1]
  %v1940 = vlaneseq
  %v1941 = vshrl.u32 %v1940, 7
  %v1942 = vsub.s32 0, %v1941
  %v1943 = vrot.slane %v1938, %v1942
  %1944 = vrot.lane.b32.xlu0 %v1943, 96
  %v1945 = vpop.permute.xlu0 %1944
  %v1947 = vmul.f32 %v1937, %v1945
  %v1948 = vld [vmem:[%s8] sm:$0x1]
  %v1950 = vlaneseq
  %v1951 = vshrl.u32 %v1950, 7
  %v1952 = vsub.s32 0, %v1951
  %v1953 = vrot.slane %v1948, %v1952
  %1954 = vrot.lane.b32.xlu0 %v1953, 96
  %v1955 = vpop.permute.xlu0 %1954
  %v1957 = vadd.f32 %v1947, %v1955
  %v1958 = vld [vmem:[%s9] sm:$0x1]
  %v1960 = vlaneseq
  %v1961 = vshrl.u32 %v1960, 7
  %v1962 = vsub.s32 0, %v1961
  %v1963 = vrot.slane %v1958, %v1962
  %1964 = vrot.lane.b32.xlu0 %v1963, 96
  %v1965 = vpop.permute.xlu0 %1964
  %v1967 = vmul.f32 %v1957, %v1965
  %1969 = vrot.lane.b32.xlu0 %v1967, 32
  %v1970 = vpop.permute.xlu0 %1969
  %v1972 = vsel %vm190, %v1970, 0.0
  %1973 = vadd.xlane.f32.xlu0 %v1972
  %v1974 = vpop.xlane.xlu0 %1973
  %v1975 = vld [vmem:[#allocation2] sm:$0x1]
  %v1977 = vlaneseq
  %v1978 = vshrl.u32 %v1977, 7
  %v1979 = vsub.s32 0, %v1978
  %v1980 = vrot.slane %v1975, %v1979
  %v1982 = vadd.f32 %v1974, %v1980
  %vm1983 = vcmask 7168
  %1984 = vst.msk [vmem:[%s11] sm:$0xff] %vm1983, %v1982
  // Predicated region
  $region46: #{lstm_model_forward.1} parent=0 // pred_check
    _
  $region47: #{lstm_model_forward.1} parent=0 // pred_check_branch
    %1986 = sbr.rel (0) target = $region49
  $region48: #{lstm_model_forward.1} parent=0 // pred_region
    _
  $region49: #{lstm_model_forward.1} parent=0 // pred_fallthru
    _
  // Predicated region
  $region50: #{lstm_model_forward.1} parent=0 // pred_check
    _
  $region51: #{lstm_model_forward.1} parent=0 // pred_check_branch
    %1988 = sbr.rel (0) target = $region53
  $region52: #{lstm_model_forward.1} parent=0 // pred_region
    _
  $region53: #{lstm_model_forward.1} parent=0 // pred_fallthru
    _

</llo_original>
